<compile_context>
chip_gen: v5e
topology: v5e:2x2
jax: 0.10.0
libtpu: 0.0.40
codegen_flags: <defaults>
</compile_context>

<pallas_src>
import math

import jax
import jax.numpy as jnp
from jax.experimental import pallas as pl
from jax.experimental.pallas import tpu as pltpu


# ---------------------------------------------------------------------------
# Pallas kernel
# ---------------------------------------------------------------------------
def _make_decoder_kernel(num_layers: int, seq_len: int, batch: int,
                         hidden_size: int, input_size: int):
    L, S, B, H, IN = num_layers, seq_len, batch, hidden_size, input_size
    N_LAYER_ARGS = 4  # per layer: wih3 (in_l,3H), whh3 (H,3H), b_i3 (1,3H), b_h3 (1,3H)

    def kernel(*refs):
        # inputs
        x_ref, h0_ref = refs[0], refs[1]                     # (S*B, IN), (L, B, H)
        w_refs = refs[2:2 + N_LAYER_ARGS * L]
        fc_w_ref, fc_b_ref, out_w_ref, out_b_ref = refs[2 + N_LAYER_ARGS * L:
                                                        6 + N_LAYER_ARGS * L]
        # outputs
        out_ref = refs[6 + N_LAYER_ARGS * L]                 # (S*B, OUT)
        hn_ref = refs[7 + N_LAYER_ARGS * L]                  # (L, B, H)

        # layer input, time-major rows: rows t*B:(t+1)*B correspond to timestep t
        layer_input = x_ref[...].astype(jnp.float32)         # (S*B, IN)

        hn_list = []
        for l in range(L):
            base = N_LAYER_ARGS * l
            wih3 = w_refs[base + 0][...]                     # (in_l, 3H)
            whh3 = w_refs[base + 1][...]                     # (H, 3H)
            b_i3 = w_refs[base + 2][...]                     # (1, 3H)
            b_h3 = w_refs[base + 3][...]                     # (1, 3H)

            # input-side gate projections for the whole sequence: ONE matmul
            gi_all = (jnp.dot(layer_input, wih3,
                              preferred_element_type=jnp.float32)
                      + b_i3)                                # (S*B, 3H)

            # hoist the hidden-side bias broadcast out of the unrolled loop
            b_h3_b = jnp.broadcast_to(b_h3, (B, 3 * H))      # (B, 3H)

            h = h0_ref[l].astype(jnp.float32)                # (B, H)
            hs_seq = []
            for t in range(S):
                gi = gi_all[t * B:(t + 1) * B, :]            # (B, 3H)
                gh = (jnp.dot(h, whh3,
                              preferred_element_type=jnp.float32)
                      + b_h3_b)                              # (B, 3H), single MXU pass
                # fused r/z: one sigmoid over a (B, 2H) block
                rz = jax.nn.sigmoid(gi[:, :2 * H] + gh[:, :2 * H])
                r = rz[:, :H]
                z = rz[:, H:]
                n = jnp.tanh(gi[:, 2 * H:] + r * gh[:, 2 * H:])
                h = (1.0 - z) * n + z * h
                hs_seq.append(h)

            hn_list.append(h)
            # sequence output of this layer -> input of the next / head
            layer_input = jnp.concatenate(hs_seq, axis=0)    # (S*B, H)

        # final hidden state: written exactly once
        hn_ref[...] = jnp.stack(hn_list, axis=0).astype(hn_ref.dtype)

        # head: fc -> relu -> out, once over all S*B rows (lane-dense batched matmuls)
        fc = (jnp.dot(layer_input, fc_w_ref[...],
                      preferred_element_type=jnp.float32)
              + fc_b_ref[...])
        fc = jnp.maximum(fc, 0.0)
        y = (jnp.dot(fc, out_w_ref[...],
                     preferred_element_type=jnp.float32)
             + out_b_ref[...])
        out_ref[...] = y.astype(out_ref.dtype)

    return kernel


# ---------------------------------------------------------------------------
# Wrapper (glue: transpose/reshape, packed weights, BlockSpecs, pallas_call)
# ---------------------------------------------------------------------------
def decoder_rnn_forward(params, inp, hidden):
    """inp: (B, S, IN) batch_first; hidden: (L, B, H).  Returns (out, h_n)."""
    B, S, IN = inp.shape
    L, _, H = hidden.shape
    FC = params["fc_b"].shape[-1]
    OUT = params["out_b"].shape[-1]
    dtype = inp.dtype

    # time-major rows: row t*B + b == (timestep t, batch b)
    x_2d = jnp.transpose(inp, (1, 0, 2)).reshape(S * B, IN)

    # packed per-layer params (gate order r|z|n, as in torch.nn.GRU)
    weight_args = []
    for l in range(L):
        weight_args += [params[f"wih_t_l{l}"],               # (in_l, 3H)
                        params[f"whh_t_l{l}"],               # (H, 3H)
                        params[f"bih_l{l}"],                 # (1, 3H)
                        params[f"bhh_l{l}"]]                 # (1, 3H)
    weight_args += [params["fc_w_t"], params["fc_b"],
                    params["out_w_t"], params["out_b"]]

    def full_spec(shape):
        rank = len(shape)
        return pl.BlockSpec(tuple(shape), lambda *_, r=rank: (0,) * r)

    in_specs = [full_spec((S * B, IN)), full_spec((L, B, H))]
    in_specs += [full_spec(tuple(w.shape)) for w in weight_args]
    out_specs = [full_spec((S * B, OUT)), full_spec((L, B, H))]

    # Advisory cost estimate for the XLA scheduler.
    gru_flops = 0
    for l in range(L):
        in_l = IN if l == 0 else H
        gru_flops += 2 * S * B * in_l * 3 * H            # batched input-side projection
        gru_flops += S * 2 * B * H * 3 * H               # per-step hidden-side matmul
    head_flops = 2 * S * B * (H * FC + FC * OUT)
    transcendentals = S * L * 3 * B * H
    bytes_accessed = 4 * (int(x_2d.size) + int(hidden.size)
                          + sum(int(w.size) for w in weight_args)
                          + S * B * OUT + L * B * H)

    kernel = _make_decoder_kernel(L, S, B, H, IN)

    out2d, h_n = pl.pallas_call(
        kernel,
        out_shape=(
            jax.ShapeDtypeStruct((S * B, OUT), dtype),
            jax.ShapeDtypeStruct((L, B, H), dtype),
        ),
        grid_spec=pltpu.PrefetchScalarGridSpec(
            num_scalar_prefetch=0,
            grid=(1,),                                   # single invocation
            in_specs=in_specs,
            out_specs=out_specs,
        ),
        compiler_params=pltpu.CompilerParams(
            dimension_semantics=("arbitrary",)),
        cost_estimate=pl.CostEstimate(
            flops=gru_flops + head_flops,
            transcendentals=transcendentals,
            bytes_accessed=bytes_accessed),
    )(x_2d, hidden, *weight_args)

    out_tm = out2d.reshape(S, B, OUT)                    # time-major output
    return jnp.transpose(out_tm, (1, 0, 2)), h_n         # back to batch_first


# ---------------------------------------------------------------------------
# Deterministic parameter init (PyTorch-style uniform(-1/sqrt(H), 1/sqrt(H)))
# ---------------------------------------------------------------------------
def init_params(key, input_size, hidden_size, num_layers, fc_units, output_size):
    H = hidden_size
    k = 1.0 / math.sqrt(H)
    params = {}
    for l in range(num_layers):
        in_l = input_size if l == 0 else H
        key, k1, k2, k3, k4 = jax.random.split(key, 5)
        params[f"wih_t_l{l}"] = jax.random.uniform(k1, (in_l, 3 * H), jnp.float32, -k, k)
        params[f"whh_t_l{l}"] = jax.random.uniform(k2, (H, 3 * H), jnp.float32, -k, k)
        params[f"bih_l{l}"] = jax.random.uniform(k3, (1, 3 * H), jnp.float32, -k, k)
        params[f"bhh_l{l}"] = jax.random.uniform(k4, (1, 3 * H), jnp.float32, -k, k)
    key, k1, k2, k3, k4 = jax.random.split(key, 5)
    kf = 1.0 / math.sqrt(H)
    params["fc_w_t"] = jax.random.uniform(k1, (H, fc_units), jnp.float32, -kf, kf)
    params["fc_b"] = jax.random.uniform(k2, (1, fc_units), jnp.float32, -kf, kf)
    ko = 1.0 / math.sqrt(fc_units)
    params["out_w_t"] = jax.random.uniform(k3, (fc_units, output_size), jnp.float32, -ko, ko)
    params["out_b"] = jax.random.uniform(k4, (1, output_size), jnp.float32, -ko, ko)
    return params


# ---------------------------------------------------------------------------
# Pure-JAX reference (matches torch.nn.GRU semantics, gate order r,z,n)
# ---------------------------------------------------------------------------
def reference_forward(params, inp, hidden):
    B, S, IN = inp.shape
    L, _, H = hidden.shape
    h = [hidden[l] for l in range(L)]
    outs = []
    for t in range(S):
        x = inp[:, t, :]
        for l in range(L):
            gi = x @ params[f"wih_t_l{l}"] + params[f"bih_l{l}"]
            gh = h[l] @ params[f"whh_t_l{l}"] + params[f"bhh_l{l}"]
            r = jax.nn.sigmoid(gi[:, :H] + gh[:, :H])
            z = jax.nn.sigmoid(gi[:, H:2 * H] + gh[:, H:2 * H])
            n = jnp.tanh(gi[:, 2 * H:] + r * gh[:, 2 * H:])
            h[l] = (1.0 - z) * n + z * h[l]
            x = h[l]
        y = jnp.maximum(x @ params["fc_w_t"] + params["fc_b"], 0.0)
        y = y @ params["out_w_t"] + params["out_b"]
        outs.append(y)
    return jnp.stack(outs, axis=1), jnp.stack(h, axis=0)


if __name__ == "__main__":
    # small shapes consistent with the module's forward
    B, S = 2, 8                    # batch, sequence length
    INPUT_SIZE = 4
    HIDDEN = 32
    NUM_LAYERS = 2
    FC_UNITS = 16
    OUTPUT_SIZE = 4

    key = jax.random.PRNGKey(0)
    key, kp, kx, kh = jax.random.split(key, 4)
    params = init_params(kp, INPUT_SIZE, HIDDEN, NUM_LAYERS, FC_UNITS, OUTPUT_SIZE)
    x = jax.random.normal(kx, (B, S, INPUT_SIZE), jnp.float32)
    h0 = jax.random.normal(kh, (NUM_LAYERS, B, HIDDEN), jnp.float32)

    out, h_n = decoder_rnn_forward(params, x, h0)
    out = jax.block_until_ready(out)
    h_n = jax.block_until_ready(h_n)

    ref_out, ref_hn = reference_forward(params, x, h0)
    assert out.shape == (B, S, OUTPUT_SIZE)
    assert h_n.shape == (NUM_LAYERS, B, HIDDEN)
    assert jnp.allclose(out, ref_out, atol=1e-5, rtol=1e-5)
    assert jnp.allclose(h_n, ref_hn, atol=1e-5, rtol=1e-5)

    print("KERNEL_OK")
</pallas_src>

<mosaic_0001>
module attributes {stable_mosaic.version = 11 : i64} {
  func.func @kernel(%arg0: i32, %arg1: memref<16x4xf32, #tpu.memory_space<vmem>>, %arg2: memref<2x2x32xf32, #tpu.memory_space<vmem>>, %arg3: memref<4x96xf32, #tpu.memory_space<vmem>>, %arg4: memref<32x96xf32, #tpu.memory_space<vmem>>, %arg5: memref<1x96xf32, #tpu.memory_space<vmem>>, %arg6: memref<1x96xf32, #tpu.memory_space<vmem>>, %arg7: memref<32x96xf32, #tpu.memory_space<vmem>>, %arg8: memref<32x96xf32, #tpu.memory_space<vmem>>, %arg9: memref<1x96xf32, #tpu.memory_space<vmem>>, %arg10: memref<1x96xf32, #tpu.memory_space<vmem>>, %arg11: memref<32x16xf32, #tpu.memory_space<vmem>>, %arg12: memref<1x16xf32, #tpu.memory_space<vmem>>, %arg13: memref<16x4xf32, #tpu.memory_space<vmem>>, %arg14: memref<1x4xf32, #tpu.memory_space<vmem>>, %arg15: memref<16x4xf32, #tpu.memory_space<vmem>>, %arg16: memref<2x2x32xf32, #tpu.memory_space<vmem>>) attributes {dimension_semantics = [#tpu.dimension_semantics<arbitrary>], iteration_bounds = array<i64: 1>, scalar_prefetch = 0 : i64, scratch_operands = 0 : i64, tpu.core_type = #tpu.core_type<tc>, window_params = [{pipeline_mode = #tpu.pipeline_mode<synchronous>, transform_indices = @transform_0, window_bounds = array<i64: 16, 4>}, {pipeline_mode = #tpu.pipeline_mode<synchronous>, transform_indices = @transform_1, window_bounds = array<i64: 2, 2, 32>}, {pipeline_mode = #tpu.pipeline_mode<synchronous>, transform_indices = @transform_2, window_bounds = array<i64: 4, 96>}, {pipeline_mode = #tpu.pipeline_mode<synchronous>, transform_indices = @transform_3, window_bounds = array<i64: 32, 96>}, {pipeline_mode = #tpu.pipeline_mode<synchronous>, transform_indices = @transform_4, window_bounds = array<i64: 1, 96>}, {pipeline_mode = #tpu.pipeline_mode<synchronous>, transform_indices = @transform_5, window_bounds = array<i64: 1, 96>}, {pipeline_mode = #tpu.pipeline_mode<synchronous>, transform_indices = @transform_6, window_bounds = array<i64: 32, 96>}, {pipeline_mode = #tpu.pipeline_mode<synchronous>, transform_indices = @transform_7, window_bounds = array<i64: 32, 96>}, {pipeline_mode = #tpu.pipeline_mode<synchronous>, transform_indices = @transform_8, window_bounds = array<i64: 1, 96>}, {pipeline_mode = #tpu.pipeline_mode<synchronous>, transform_indices = @transform_9, window_bounds = array<i64: 1, 96>}, {pipeline_mode = #tpu.pipeline_mode<synchronous>, transform_indices = @transform_10, window_bounds = array<i64: 32, 16>}, {pipeline_mode = #tpu.pipeline_mode<synchronous>, transform_indices = @transform_11, window_bounds = array<i64: 1, 16>}, {pipeline_mode = #tpu.pipeline_mode<synchronous>, transform_indices = @transform_12, window_bounds = array<i64: 16, 4>}, {pipeline_mode = #tpu.pipeline_mode<synchronous>, transform_indices = @transform_13, window_bounds = array<i64: 1, 4>}, {pipeline_mode = #tpu.pipeline_mode<synchronous>, transform_indices = @transform_14, window_bounds = array<i64: 16, 4>}, {pipeline_mode = #tpu.pipeline_mode<synchronous>, transform_indices = @transform_15, window_bounds = array<i64: 2, 2, 32>}]} {
    %c0 = arith.constant 0 : index
    %c0_0 = arith.constant 0 : index
    %0 = vector.load %arg1[%c0, %c0_0] : memref<16x4xf32, #tpu.memory_space<vmem>>, vector<16x4xf32>
    %c0_1 = arith.constant 0 : index
    %c0_2 = arith.constant 0 : index
    %1 = vector.load %arg3[%c0_1, %c0_2] : memref<4x96xf32, #tpu.memory_space<vmem>>, vector<4x96xf32>
    %c0_3 = arith.constant 0 : index
    %c0_4 = arith.constant 0 : index
    %2 = vector.load %arg4[%c0_3, %c0_4] : memref<32x96xf32, #tpu.memory_space<vmem>>, vector<32x96xf32>
    %c0_5 = arith.constant 0 : index
    %c0_6 = arith.constant 0 : index
    %3 = vector.load %arg5[%c0_5, %c0_6] : memref<1x96xf32, #tpu.memory_space<vmem>>, vector<1x96xf32>
    %c0_7 = arith.constant 0 : index
    %c0_8 = arith.constant 0 : index
    %4 = vector.load %arg6[%c0_7, %c0_8] : memref<1x96xf32, #tpu.memory_space<vmem>>, vector<1x96xf32>
    %cst = arith.constant dense<0.000000e+00> : vector<16x96xf32>
    %5 = tpu.matmul %0, %1, %cst {dimension_numbers = #tpu.dot_dimension_numbers<[1], [0], [0], [1], [0, 0, 1, 1], [], []>} : vector<16x4xf32>, vector<4x96xf32>, vector<16x96xf32> -> vector<16x96xf32>
    %6 = vector.broadcast %3 : vector<1x96xf32> to vector<16x96xf32>
    %7 = arith.addf %5, %6 : vector<16x96xf32>
    %8 = vector.shape_cast %4 : vector<1x96xf32> to vector<1x96xf32>
    %9 = vector.broadcast %8 : vector<1x96xf32> to vector<2x96xf32>
    %c0_9 = arith.constant 0 : index
    %c0_10 = arith.constant 0 : index
    %c0_11 = arith.constant 0 : index
    %10 = vector.load %arg2[%c0_9, %c0_10, %c0_11] : memref<2x2x32xf32, #tpu.memory_space<vmem>>, vector<1x2x32xf32>
    %11 = vector.shape_cast %10 : vector<1x2x32xf32> to vector<2x32xf32>
    %12 = vector.extract_strided_slice %7 {offsets = [0, 0], sizes = [2, 96], strides = [1, 1]} : vector<16x96xf32> to vector<2x96xf32>
    %cst_12 = arith.constant dense<0.000000e+00> : vector<2x96xf32>
    %13 = tpu.matmul %11, %2, %cst_12 {dimension_numbers = #tpu.dot_dimension_numbers<[1], [0], [0], [1], [0, 0, 1, 1], [], []>} : vector<2x32xf32>, vector<32x96xf32>, vector<2x96xf32> -> vector<2x96xf32>
    %14 = arith.addf %13, %9 : vector<2x96xf32>
    %15 = vector.extract_strided_slice %12 {offsets = [0, 0], sizes = [2, 64], strides = [1, 1]} : vector<2x96xf32> to vector<2x64xf32>
    %16 = vector.extract_strided_slice %14 {offsets = [0, 0], sizes = [2, 64], strides = [1, 1]} : vector<2x96xf32> to vector<2x64xf32>
    %17 = arith.addf %15, %16 : vector<2x64xf32>
    %18 = arith.negf %17 : vector<2x64xf32>
    %19 = math.exp %18 : vector<2x64xf32>
    %cst_13 = arith.constant 1.000000e+00 : f32
    %20 = vector.broadcast %cst_13 : f32 to vector<2x64xf32>
    %21 = arith.addf %20, %19 : vector<2x64xf32>
    %22 = arith.divf %20, %21 : vector<2x64xf32>
    %23 = vector.extract_strided_slice %22 {offsets = [0, 0], sizes = [2, 32], strides = [1, 1]} : vector<2x64xf32> to vector<2x32xf32>
    %24 = vector.extract_strided_slice %22 {offsets = [0, 32], sizes = [2, 32], strides = [1, 1]} : vector<2x64xf32> to vector<2x32xf32>
    %25 = vector.extract_strided_slice %12 {offsets = [0, 64], sizes = [2, 32], strides = [1, 1]} : vector<2x96xf32> to vector<2x32xf32>
    %26 = vector.extract_strided_slice %14 {offsets = [0, 64], sizes = [2, 32], strides = [1, 1]} : vector<2x96xf32> to vector<2x32xf32>
    %27 = arith.mulf %23, %26 : vector<2x32xf32>
    %28 = arith.addf %25, %27 : vector<2x32xf32>
    %29 = math.tanh %28 : vector<2x32xf32>
    %cst_14 = arith.constant 1.000000e+00 : f32
    %30 = vector.broadcast %cst_14 : f32 to vector<2x32xf32>
    %31 = arith.subf %30, %24 : vector<2x32xf32>
    %32 = arith.mulf %31, %29 : vector<2x32xf32>
    %33 = arith.mulf %24, %11 : vector<2x32xf32>
    %34 = arith.addf %32, %33 : vector<2x32xf32>
    %35 = vector.extract_strided_slice %7 {offsets = [2, 0], sizes = [2, 96], strides = [1, 1]} : vector<16x96xf32> to vector<2x96xf32>
    %cst_15 = arith.constant dense<0.000000e+00> : vector<2x96xf32>
    %36 = tpu.matmul %34, %2, %cst_15 {dimension_numbers = #tpu.dot_dimension_numbers<[1], [0], [0], [1], [0, 0, 1, 1], [], []>} : vector<2x32xf32>, vector<32x96xf32>, vector<2x96xf32> -> vector<2x96xf32>
    %37 = arith.addf %36, %9 : vector<2x96xf32>
    %38 = vector.extract_strided_slice %35 {offsets = [0, 0], sizes = [2, 64], strides = [1, 1]} : vector<2x96xf32> to vector<2x64xf32>
    %39 = vector.extract_strided_slice %37 {offsets = [0, 0], sizes = [2, 64], strides = [1, 1]} : vector<2x96xf32> to vector<2x64xf32>
    %40 = arith.addf %38, %39 : vector<2x64xf32>
    %41 = arith.negf %40 : vector<2x64xf32>
    %42 = math.exp %41 : vector<2x64xf32>
    %cst_16 = arith.constant 1.000000e+00 : f32
    %43 = vector.broadcast %cst_16 : f32 to vector<2x64xf32>
    %44 = arith.addf %43, %42 : vector<2x64xf32>
    %45 = arith.divf %43, %44 : vector<2x64xf32>
    %46 = vector.extract_strided_slice %45 {offsets = [0, 0], sizes = [2, 32], strides = [1, 1]} : vector<2x64xf32> to vector<2x32xf32>
    %47 = vector.extract_strided_slice %45 {offsets = [0, 32], sizes = [2, 32], strides = [1, 1]} : vector<2x64xf32> to vector<2x32xf32>
    %48 = vector.extract_strided_slice %35 {offsets = [0, 64], sizes = [2, 32], strides = [1, 1]} : vector<2x96xf32> to vector<2x32xf32>
    %49 = vector.extract_strided_slice %37 {offsets = [0, 64], sizes = [2, 32], strides = [1, 1]} : vector<2x96xf32> to vector<2x32xf32>
    %50 = arith.mulf %46, %49 : vector<2x32xf32>
    %51 = arith.addf %48, %50 : vector<2x32xf32>
    %52 = math.tanh %51 : vector<2x32xf32>
    %cst_17 = arith.constant 1.000000e+00 : f32
    %53 = vector.broadcast %cst_17 : f32 to vector<2x32xf32>
    %54 = arith.subf %53, %47 : vector<2x32xf32>
    %55 = arith.mulf %54, %52 : vector<2x32xf32>
    %56 = arith.mulf %47, %34 : vector<2x32xf32>
    %57 = arith.addf %55, %56 : vector<2x32xf32>
    %58 = vector.extract_strided_slice %7 {offsets = [4, 0], sizes = [2, 96], strides = [1, 1]} : vector<16x96xf32> to vector<2x96xf32>
    %cst_18 = arith.constant dense<0.000000e+00> : vector<2x96xf32>
    %59 = tpu.matmul %57, %2, %cst_18 {dimension_numbers = #tpu.dot_dimension_numbers<[1], [0], [0], [1], [0, 0, 1, 1], [], []>} : vector<2x32xf32>, vector<32x96xf32>, vector<2x96xf32> -> vector<2x96xf32>
    %60 = arith.addf %59, %9 : vector<2x96xf32>
    %61 = vector.extract_strided_slice %58 {offsets = [0, 0], sizes = [2, 64], strides = [1, 1]} : vector<2x96xf32> to vector<2x64xf32>
    %62 = vector.extract_strided_slice %60 {offsets = [0, 0], sizes = [2, 64], strides = [1, 1]} : vector<2x96xf32> to vector<2x64xf32>
    %63 = arith.addf %61, %62 : vector<2x64xf32>
    %64 = arith.negf %63 : vector<2x64xf32>
    %65 = math.exp %64 : vector<2x64xf32>
    %cst_19 = arith.constant 1.000000e+00 : f32
    %66 = vector.broadcast %cst_19 : f32 to vector<2x64xf32>
    %67 = arith.addf %66, %65 : vector<2x64xf32>
    %68 = arith.divf %66, %67 : vector<2x64xf32>
    %69 = vector.extract_strided_slice %68 {offsets = [0, 0], sizes = [2, 32], strides = [1, 1]} : vector<2x64xf32> to vector<2x32xf32>
    %70 = vector.extract_strided_slice %68 {offsets = [0, 32], sizes = [2, 32], strides = [1, 1]} : vector<2x64xf32> to vector<2x32xf32>
    %71 = vector.extract_strided_slice %58 {offsets = [0, 64], sizes = [2, 32], strides = [1, 1]} : vector<2x96xf32> to vector<2x32xf32>
    %72 = vector.extract_strided_slice %60 {offsets = [0, 64], sizes = [2, 32], strides = [1, 1]} : vector<2x96xf32> to vector<2x32xf32>
    %73 = arith.mulf %69, %72 : vector<2x32xf32>
    %74 = arith.addf %71, %73 : vector<2x32xf32>
    %75 = math.tanh %74 : vector<2x32xf32>
    %cst_20 = arith.constant 1.000000e+00 : f32
    %76 = vector.broadcast %cst_20 : f32 to vector<2x32xf32>
    %77 = arith.subf %76, %70 : vector<2x32xf32>
    %78 = arith.mulf %77, %75 : vector<2x32xf32>
    %79 = arith.mulf %70, %57 : vector<2x32xf32>
    %80 = arith.addf %78, %79 : vector<2x32xf32>
    %81 = vector.extract_strided_slice %7 {offsets = [6, 0], sizes = [2, 96], strides = [1, 1]} : vector<16x96xf32> to vector<2x96xf32>
    %cst_21 = arith.constant dense<0.000000e+00> : vector<2x96xf32>
    %82 = tpu.matmul %80, %2, %cst_21 {dimension_numbers = #tpu.dot_dimension_numbers<[1], [0], [0], [1], [0, 0, 1, 1], [], []>} : vector<2x32xf32>, vector<32x96xf32>, vector<2x96xf32> -> vector<2x96xf32>
    %83 = arith.addf %82, %9 : vector<2x96xf32>
    %84 = vector.extract_strided_slice %81 {offsets = [0, 0], sizes = [2, 64], strides = [1, 1]} : vector<2x96xf32> to vector<2x64xf32>
    %85 = vector.extract_strided_slice %83 {offsets = [0, 0], sizes = [2, 64], strides = [1, 1]} : vector<2x96xf32> to vector<2x64xf32>
    %86 = arith.addf %84, %85 : vector<2x64xf32>
    %87 = arith.negf %86 : vector<2x64xf32>
    %88 = math.exp %87 : vector<2x64xf32>
    %cst_22 = arith.constant 1.000000e+00 : f32
    %89 = vector.broadcast %cst_22 : f32 to vector<2x64xf32>
    %90 = arith.addf %89, %88 : vector<2x64xf32>
    %91 = arith.divf %89, %90 : vector<2x64xf32>
    %92 = vector.extract_strided_slice %91 {offsets = [0, 0], sizes = [2, 32], strides = [1, 1]} : vector<2x64xf32> to vector<2x32xf32>
    %93 = vector.extract_strided_slice %91 {offsets = [0, 32], sizes = [2, 32], strides = [1, 1]} : vector<2x64xf32> to vector<2x32xf32>
    %94 = vector.extract_strided_slice %81 {offsets = [0, 64], sizes = [2, 32], strides = [1, 1]} : vector<2x96xf32> to vector<2x32xf32>
    %95 = vector.extract_strided_slice %83 {offsets = [0, 64], sizes = [2, 32], strides = [1, 1]} : vector<2x96xf32> to vector<2x32xf32>
    %96 = arith.mulf %92, %95 : vector<2x32xf32>
    %97 = arith.addf %94, %96 : vector<2x32xf32>
    %98 = math.tanh %97 : vector<2x32xf32>
    %cst_23 = arith.constant 1.000000e+00 : f32
    %99 = vector.broadcast %cst_23 : f32 to vector<2x32xf32>
    %100 = arith.subf %99, %93 : vector<2x32xf32>
    %101 = arith.mulf %100, %98 : vector<2x32xf32>
    %102 = arith.mulf %93, %80 : vector<2x32xf32>
    %103 = arith.addf %101, %102 : vector<2x32xf32>
    %104 = vector.extract_strided_slice %7 {offsets = [8, 0], sizes = [2, 96], strides = [1, 1]} : vector<16x96xf32> to vector<2x96xf32>
    %cst_24 = arith.constant dense<0.000000e+00> : vector<2x96xf32>
    %105 = tpu.matmul %103, %2, %cst_24 {dimension_numbers = #tpu.dot_dimension_numbers<[1], [0], [0], [1], [0, 0, 1, 1], [], []>} : vector<2x32xf32>, vector<32x96xf32>, vector<2x96xf32> -> vector<2x96xf32>
    %106 = arith.addf %105, %9 : vector<2x96xf32>
    %107 = vector.extract_strided_slice %104 {offsets = [0, 0], sizes = [2, 64], strides = [1, 1]} : vector<2x96xf32> to vector<2x64xf32>
    %108 = vector.extract_strided_slice %106 {offsets = [0, 0], sizes = [2, 64], strides = [1, 1]} : vector<2x96xf32> to vector<2x64xf32>
    %109 = arith.addf %107, %108 : vector<2x64xf32>
    %110 = arith.negf %109 : vector<2x64xf32>
    %111 = math.exp %110 : vector<2x64xf32>
    %cst_25 = arith.constant 1.000000e+00 : f32
    %112 = vector.broadcast %cst_25 : f32 to vector<2x64xf32>
    %113 = arith.addf %112, %111 : vector<2x64xf32>
    %114 = arith.divf %112, %113 : vector<2x64xf32>
    %115 = vector.extract_strided_slice %114 {offsets = [0, 0], sizes = [2, 32], strides = [1, 1]} : vector<2x64xf32> to vector<2x32xf32>
    %116 = vector.extract_strided_slice %114 {offsets = [0, 32], sizes = [2, 32], strides = [1, 1]} : vector<2x64xf32> to vector<2x32xf32>
    %117 = vector.extract_strided_slice %104 {offsets = [0, 64], sizes = [2, 32], strides = [1, 1]} : vector<2x96xf32> to vector<2x32xf32>
    %118 = vector.extract_strided_slice %106 {offsets = [0, 64], sizes = [2, 32], strides = [1, 1]} : vector<2x96xf32> to vector<2x32xf32>
    %119 = arith.mulf %115, %118 : vector<2x32xf32>
    %120 = arith.addf %117, %119 : vector<2x32xf32>
    %121 = math.tanh %120 : vector<2x32xf32>
    %cst_26 = arith.constant 1.000000e+00 : f32
    %122 = vector.broadcast %cst_26 : f32 to vector<2x32xf32>
    %123 = arith.subf %122, %116 : vector<2x32xf32>
    %124 = arith.mulf %123, %121 : vector<2x32xf32>
    %125 = arith.mulf %116, %103 : vector<2x32xf32>
    %126 = arith.addf %124, %125 : vector<2x32xf32>
    %127 = vector.extract_strided_slice %7 {offsets = [10, 0], sizes = [2, 96], strides = [1, 1]} : vector<16x96xf32> to vector<2x96xf32>
    %cst_27 = arith.constant dense<0.000000e+00> : vector<2x96xf32>
    %128 = tpu.matmul %126, %2, %cst_27 {dimension_numbers = #tpu.dot_dimension_numbers<[1], [0], [0], [1], [0, 0, 1, 1], [], []>} : vector<2x32xf32>, vector<32x96xf32>, vector<2x96xf32> -> vector<2x96xf32>
    %129 = arith.addf %128, %9 : vector<2x96xf32>
    %130 = vector.extract_strided_slice %127 {offsets = [0, 0], sizes = [2, 64], strides = [1, 1]} : vector<2x96xf32> to vector<2x64xf32>
    %131 = vector.extract_strided_slice %129 {offsets = [0, 0], sizes = [2, 64], strides = [1, 1]} : vector<2x96xf32> to vector<2x64xf32>
    %132 = arith.addf %130, %131 : vector<2x64xf32>
    %133 = arith.negf %132 : vector<2x64xf32>
    %134 = math.exp %133 : vector<2x64xf32>
    %cst_28 = arith.constant 1.000000e+00 : f32
    %135 = vector.broadcast %cst_28 : f32 to vector<2x64xf32>
    %136 = arith.addf %135, %134 : vector<2x64xf32>
    %137 = arith.divf %135, %136 : vector<2x64xf32>
    %138 = vector.extract_strided_slice %137 {offsets = [0, 0], sizes = [2, 32], strides = [1, 1]} : vector<2x64xf32> to vector<2x32xf32>
    %139 = vector.extract_strided_slice %137 {offsets = [0, 32], sizes = [2, 32], strides = [1, 1]} : vector<2x64xf32> to vector<2x32xf32>
    %140 = vector.extract_strided_slice %127 {offsets = [0, 64], sizes = [2, 32], strides = [1, 1]} : vector<2x96xf32> to vector<2x32xf32>
    %141 = vector.extract_strided_slice %129 {offsets = [0, 64], sizes = [2, 32], strides = [1, 1]} : vector<2x96xf32> to vector<2x32xf32>
    %142 = arith.mulf %138, %141 : vector<2x32xf32>
    %143 = arith.addf %140, %142 : vector<2x32xf32>
    %144 = math.tanh %143 : vector<2x32xf32>
    %cst_29 = arith.constant 1.000000e+00 : f32
    %145 = vector.broadcast %cst_29 : f32 to vector<2x32xf32>
    %146 = arith.subf %145, %139 : vector<2x32xf32>
    %147 = arith.mulf %146, %144 : vector<2x32xf32>
    %148 = arith.mulf %139, %126 : vector<2x32xf32>
    %149 = arith.addf %147, %148 : vector<2x32xf32>
    %150 = vector.extract_strided_slice %7 {offsets = [12, 0], sizes = [2, 96], strides = [1, 1]} : vector<16x96xf32> to vector<2x96xf32>
    %cst_30 = arith.constant dense<0.000000e+00> : vector<2x96xf32>
    %151 = tpu.matmul %149, %2, %cst_30 {dimension_numbers = #tpu.dot_dimension_numbers<[1], [0], [0], [1], [0, 0, 1, 1], [], []>} : vector<2x32xf32>, vector<32x96xf32>, vector<2x96xf32> -> vector<2x96xf32>
    %152 = arith.addf %151, %9 : vector<2x96xf32>
    %153 = vector.extract_strided_slice %150 {offsets = [0, 0], sizes = [2, 64], strides = [1, 1]} : vector<2x96xf32> to vector<2x64xf32>
    %154 = vector.extract_strided_slice %152 {offsets = [0, 0], sizes = [2, 64], strides = [1, 1]} : vector<2x96xf32> to vector<2x64xf32>
    %155 = arith.addf %153, %154 : vector<2x64xf32>
    %156 = arith.negf %155 : vector<2x64xf32>
    %157 = math.exp %156 : vector<2x64xf32>
    %cst_31 = arith.constant 1.000000e+00 : f32
    %158 = vector.broadcast %cst_31 : f32 to vector<2x64xf32>
    %159 = arith.addf %158, %157 : vector<2x64xf32>
    %160 = arith.divf %158, %159 : vector<2x64xf32>
    %161 = vector.extract_strided_slice %160 {offsets = [0, 0], sizes = [2, 32], strides = [1, 1]} : vector<2x64xf32> to vector<2x32xf32>
    %162 = vector.extract_strided_slice %160 {offsets = [0, 32], sizes = [2, 32], strides = [1, 1]} : vector<2x64xf32> to vector<2x32xf32>
    %163 = vector.extract_strided_slice %150 {offsets = [0, 64], sizes = [2, 32], strides = [1, 1]} : vector<2x96xf32> to vector<2x32xf32>
    %164 = vector.extract_strided_slice %152 {offsets = [0, 64], sizes = [2, 32], strides = [1, 1]} : vector<2x96xf32> to vector<2x32xf32>
    %165 = arith.mulf %161, %164 : vector<2x32xf32>
    %166 = arith.addf %163, %165 : vector<2x32xf32>
    %167 = math.tanh %166 : vector<2x32xf32>
    %cst_32 = arith.constant 1.000000e+00 : f32
    %168 = vector.broadcast %cst_32 : f32 to vector<2x32xf32>
    %169 = arith.subf %168, %162 : vector<2x32xf32>
    %170 = arith.mulf %169, %167 : vector<2x32xf32>
    %171 = arith.mulf %162, %149 : vector<2x32xf32>
    %172 = arith.addf %170, %171 : vector<2x32xf32>
    %173 = vector.extract_strided_slice %7 {offsets = [14, 0], sizes = [2, 96], strides = [1, 1]} : vector<16x96xf32> to vector<2x96xf32>
    %cst_33 = arith.constant dense<0.000000e+00> : vector<2x96xf32>
    %174 = tpu.matmul %172, %2, %cst_33 {dimension_numbers = #tpu.dot_dimension_numbers<[1], [0], [0], [1], [0, 0, 1, 1], [], []>} : vector<2x32xf32>, vector<32x96xf32>, vector<2x96xf32> -> vector<2x96xf32>
    %175 = arith.addf %174, %9 : vector<2x96xf32>
    %176 = vector.extract_strided_slice %173 {offsets = [0, 0], sizes = [2, 64], strides = [1, 1]} : vector<2x96xf32> to vector<2x64xf32>
    %177 = vector.extract_strided_slice %175 {offsets = [0, 0], sizes = [2, 64], strides = [1, 1]} : vector<2x96xf32> to vector<2x64xf32>
    %178 = arith.addf %176, %177 : vector<2x64xf32>
    %179 = arith.negf %178 : vector<2x64xf32>
    %180 = math.exp %179 : vector<2x64xf32>
    %cst_34 = arith.constant 1.000000e+00 : f32
    %181 = vector.broadcast %cst_34 : f32 to vector<2x64xf32>
    %182 = arith.addf %181, %180 : vector<2x64xf32>
    %183 = arith.divf %181, %182 : vector<2x64xf32>
    %184 = vector.extract_strided_slice %183 {offsets = [0, 0], sizes = [2, 32], strides = [1, 1]} : vector<2x64xf32> to vector<2x32xf32>
    %185 = vector.extract_strided_slice %183 {offsets = [0, 32], sizes = [2, 32], strides = [1, 1]} : vector<2x64xf32> to vector<2x32xf32>
    %186 = vector.extract_strided_slice %173 {offsets = [0, 64], sizes = [2, 32], strides = [1, 1]} : vector<2x96xf32> to vector<2x32xf32>
    %187 = vector.extract_strided_slice %175 {offsets = [0, 64], sizes = [2, 32], strides = [1, 1]} : vector<2x96xf32> to vector<2x32xf32>
    %188 = arith.mulf %184, %187 : vector<2x32xf32>
    %189 = arith.addf %186, %188 : vector<2x32xf32>
    %190 = math.tanh %189 : vector<2x32xf32>
    %cst_35 = arith.constant 1.000000e+00 : f32
    %191 = vector.broadcast %cst_35 : f32 to vector<2x32xf32>
    %192 = arith.subf %191, %185 : vector<2x32xf32>
    %193 = arith.mulf %192, %190 : vector<2x32xf32>
    %194 = arith.mulf %185, %172 : vector<2x32xf32>
    %195 = arith.addf %193, %194 : vector<2x32xf32>
    %196 = tpu.concatenate %34, %57, %80, %103, %126, %149, %172, %195 in 0 : vector<2x32xf32>, vector<2x32xf32>, vector<2x32xf32>, vector<2x32xf32>, vector<2x32xf32>, vector<2x32xf32>, vector<2x32xf32>, vector<2x32xf32> -> vector<16x32xf32>
    %c0_36 = arith.constant 0 : index
    %c0_37 = arith.constant 0 : index
    %197 = vector.load %arg7[%c0_36, %c0_37] : memref<32x96xf32, #tpu.memory_space<vmem>>, vector<32x96xf32>
    %c0_38 = arith.constant 0 : index
    %c0_39 = arith.constant 0 : index
    %198 = vector.load %arg8[%c0_38, %c0_39] : memref<32x96xf32, #tpu.memory_space<vmem>>, vector<32x96xf32>
    %c0_40 = arith.constant 0 : index
    %c0_41 = arith.constant 0 : index
    %199 = vector.load %arg9[%c0_40, %c0_41] : memref<1x96xf32, #tpu.memory_space<vmem>>, vector<1x96xf32>
    %c0_42 = arith.constant 0 : index
    %c0_43 = arith.constant 0 : index
    %200 = vector.load %arg10[%c0_42, %c0_43] : memref<1x96xf32, #tpu.memory_space<vmem>>, vector<1x96xf32>
    %cst_44 = arith.constant dense<0.000000e+00> : vector<16x96xf32>
    %201 = tpu.matmul %196, %197, %cst_44 {dimension_numbers = #tpu.dot_dimension_numbers<[1], [0], [0], [1], [0, 0, 1, 1], [], []>} : vector<16x32xf32>, vector<32x96xf32>, vector<16x96xf32> -> vector<16x96xf32>
    %202 = vector.broadcast %199 : vector<1x96xf32> to vector<16x96xf32>
    %203 = arith.addf %201, %202 : vector<16x96xf32>
    %204 = vector.shape_cast %200 : vector<1x96xf32> to vector<1x96xf32>
    %205 = vector.broadcast %204 : vector<1x96xf32> to vector<2x96xf32>
    %c1 = arith.constant 1 : index
    %c0_45 = arith.constant 0 : index
    %c0_46 = arith.constant 0 : index
    %206 = vector.load %arg2[%c1, %c0_45, %c0_46] : memref<2x2x32xf32, #tpu.memory_space<vmem>>, vector<1x2x32xf32>
    %207 = vector.shape_cast %206 : vector<1x2x32xf32> to vector<2x32xf32>
    %208 = vector.extract_strided_slice %203 {offsets = [0, 0], sizes = [2, 96], strides = [1, 1]} : vector<16x96xf32> to vector<2x96xf32>
    %cst_47 = arith.constant dense<0.000000e+00> : vector<2x96xf32>
    %209 = tpu.matmul %207, %198, %cst_47 {dimension_numbers = #tpu.dot_dimension_numbers<[1], [0], [0], [1], [0, 0, 1, 1], [], []>} : vector<2x32xf32>, vector<32x96xf32>, vector<2x96xf32> -> vector<2x96xf32>
    %210 = arith.addf %209, %205 : vector<2x96xf32>
    %211 = vector.extract_strided_slice %208 {offsets = [0, 0], sizes = [2, 64], strides = [1, 1]} : vector<2x96xf32> to vector<2x64xf32>
    %212 = vector.extract_strided_slice %210 {offsets = [0, 0], sizes = [2, 64], strides = [1, 1]} : vector<2x96xf32> to vector<2x64xf32>
    %213 = arith.addf %211, %212 : vector<2x64xf32>
    %214 = arith.negf %213 : vector<2x64xf32>
    %215 = math.exp %214 : vector<2x64xf32>
    %cst_48 = arith.constant 1.000000e+00 : f32
    %216 = vector.broadcast %cst_48 : f32 to vector<2x64xf32>
    %217 = arith.addf %216, %215 : vector<2x64xf32>
    %218 = arith.divf %216, %217 : vector<2x64xf32>
    %219 = vector.extract_strided_slice %218 {offsets = [0, 0], sizes = [2, 32], strides = [1, 1]} : vector<2x64xf32> to vector<2x32xf32>
    %220 = vector.extract_strided_slice %218 {offsets = [0, 32], sizes = [2, 32], strides = [1, 1]} : vector<2x64xf32> to vector<2x32xf32>
    %221 = vector.extract_strided_slice %208 {offsets = [0, 64], sizes = [2, 32], strides = [1, 1]} : vector<2x96xf32> to vector<2x32xf32>
    %222 = vector.extract_strided_slice %210 {offsets = [0, 64], sizes = [2, 32], strides = [1, 1]} : vector<2x96xf32> to vector<2x32xf32>
    %223 = arith.mulf %219, %222 : vector<2x32xf32>
    %224 = arith.addf %221, %223 : vector<2x32xf32>
    %225 = math.tanh %224 : vector<2x32xf32>
    %cst_49 = arith.constant 1.000000e+00 : f32
    %226 = vector.broadcast %cst_49 : f32 to vector<2x32xf32>
    %227 = arith.subf %226, %220 : vector<2x32xf32>
    %228 = arith.mulf %227, %225 : vector<2x32xf32>
    %229 = arith.mulf %220, %207 : vector<2x32xf32>
    %230 = arith.addf %228, %229 : vector<2x32xf32>
    %231 = vector.extract_strided_slice %203 {offsets = [2, 0], sizes = [2, 96], strides = [1, 1]} : vector<16x96xf32> to vector<2x96xf32>
    %cst_50 = arith.constant dense<0.000000e+00> : vector<2x96xf32>
    %232 = tpu.matmul %230, %198, %cst_50 {dimension_numbers = #tpu.dot_dimension_numbers<[1], [0], [0], [1], [0, 0, 1, 1], [], []>} : vector<2x32xf32>, vector<32x96xf32>, vector<2x96xf32> -> vector<2x96xf32>
    %233 = arith.addf %232, %205 : vector<2x96xf32>
    %234 = vector.extract_strided_slice %231 {offsets = [0, 0], sizes = [2, 64], strides = [1, 1]} : vector<2x96xf32> to vector<2x64xf32>
    %235 = vector.extract_strided_slice %233 {offsets = [0, 0], sizes = [2, 64], strides = [1, 1]} : vector<2x96xf32> to vector<2x64xf32>
    %236 = arith.addf %234, %235 : vector<2x64xf32>
    %237 = arith.negf %236 : vector<2x64xf32>
    %238 = math.exp %237 : vector<2x64xf32>
    %cst_51 = arith.constant 1.000000e+00 : f32
    %239 = vector.broadcast %cst_51 : f32 to vector<2x64xf32>
    %240 = arith.addf %239, %238 : vector<2x64xf32>
    %241 = arith.divf %239, %240 : vector<2x64xf32>
    %242 = vector.extract_strided_slice %241 {offsets = [0, 0], sizes = [2, 32], strides = [1, 1]} : vector<2x64xf32> to vector<2x32xf32>
    %243 = vector.extract_strided_slice %241 {offsets = [0, 32], sizes = [2, 32], strides = [1, 1]} : vector<2x64xf32> to vector<2x32xf32>
    %244 = vector.extract_strided_slice %231 {offsets = [0, 64], sizes = [2, 32], strides = [1, 1]} : vector<2x96xf32> to vector<2x32xf32>
    %245 = vector.extract_strided_slice %233 {offsets = [0, 64], sizes = [2, 32], strides = [1, 1]} : vector<2x96xf32> to vector<2x32xf32>
    %246 = arith.mulf %242, %245 : vector<2x32xf32>
    %247 = arith.addf %244, %246 : vector<2x32xf32>
    %248 = math.tanh %247 : vector<2x32xf32>
    %cst_52 = arith.constant 1.000000e+00 : f32
    %249 = vector.broadcast %cst_52 : f32 to vector<2x32xf32>
    %250 = arith.subf %249, %243 : vector<2x32xf32>
    %251 = arith.mulf %250, %248 : vector<2x32xf32>
    %252 = arith.mulf %243, %230 : vector<2x32xf32>
    %253 = arith.addf %251, %252 : vector<2x32xf32>
    %254 = vector.extract_strided_slice %203 {offsets = [4, 0], sizes = [2, 96], strides = [1, 1]} : vector<16x96xf32> to vector<2x96xf32>
    %cst_53 = arith.constant dense<0.000000e+00> : vector<2x96xf32>
    %255 = tpu.matmul %253, %198, %cst_53 {dimension_numbers = #tpu.dot_dimension_numbers<[1], [0], [0], [1], [0, 0, 1, 1], [], []>} : vector<2x32xf32>, vector<32x96xf32>, vector<2x96xf32> -> vector<2x96xf32>
    %256 = arith.addf %255, %205 : vector<2x96xf32>
    %257 = vector.extract_strided_slice %254 {offsets = [0, 0], sizes = [2, 64], strides = [1, 1]} : vector<2x96xf32> to vector<2x64xf32>
    %258 = vector.extract_strided_slice %256 {offsets = [0, 0], sizes = [2, 64], strides = [1, 1]} : vector<2x96xf32> to vector<2x64xf32>
    %259 = arith.addf %257, %258 : vector<2x64xf32>
    %260 = arith.negf %259 : vector<2x64xf32>
    %261 = math.exp %260 : vector<2x64xf32>
    %cst_54 = arith.constant 1.000000e+00 : f32
    %262 = vector.broadcast %cst_54 : f32 to vector<2x64xf32>
    %263 = arith.addf %262, %261 : vector<2x64xf32>
    %264 = arith.divf %262, %263 : vector<2x64xf32>
    %265 = vector.extract_strided_slice %264 {offsets = [0, 0], sizes = [2, 32], strides = [1, 1]} : vector<2x64xf32> to vector<2x32xf32>
    %266 = vector.extract_strided_slice %264 {offsets = [0, 32], sizes = [2, 32], strides = [1, 1]} : vector<2x64xf32> to vector<2x32xf32>
    %267 = vector.extract_strided_slice %254 {offsets = [0, 64], sizes = [2, 32], strides = [1, 1]} : vector<2x96xf32> to vector<2x32xf32>
    %268 = vector.extract_strided_slice %256 {offsets = [0, 64], sizes = [2, 32], strides = [1, 1]} : vector<2x96xf32> to vector<2x32xf32>
    %269 = arith.mulf %265, %268 : vector<2x32xf32>
    %270 = arith.addf %267, %269 : vector<2x32xf32>
    %271 = math.tanh %270 : vector<2x32xf32>
    %cst_55 = arith.constant 1.000000e+00 : f32
    %272 = vector.broadcast %cst_55 : f32 to vector<2x32xf32>
    %273 = arith.subf %272, %266 : vector<2x32xf32>
    %274 = arith.mulf %273, %271 : vector<2x32xf32>
    %275 = arith.mulf %266, %253 : vector<2x32xf32>
    %276 = arith.addf %274, %275 : vector<2x32xf32>
    %277 = vector.extract_strided_slice %203 {offsets = [6, 0], sizes = [2, 96], strides = [1, 1]} : vector<16x96xf32> to vector<2x96xf32>
    %cst_56 = arith.constant dense<0.000000e+00> : vector<2x96xf32>
    %278 = tpu.matmul %276, %198, %cst_56 {dimension_numbers = #tpu.dot_dimension_numbers<[1], [0], [0], [1], [0, 0, 1, 1], [], []>} : vector<2x32xf32>, vector<32x96xf32>, vector<2x96xf32> -> vector<2x96xf32>
    %279 = arith.addf %278, %205 : vector<2x96xf32>
    %280 = vector.extract_strided_slice %277 {offsets = [0, 0], sizes = [2, 64], strides = [1, 1]} : vector<2x96xf32> to vector<2x64xf32>
    %281 = vector.extract_strided_slice %279 {offsets = [0, 0], sizes = [2, 64], strides = [1, 1]} : vector<2x96xf32> to vector<2x64xf32>
    %282 = arith.addf %280, %281 : vector<2x64xf32>
    %283 = arith.negf %282 : vector<2x64xf32>
    %284 = math.exp %283 : vector<2x64xf32>
    %cst_57 = arith.constant 1.000000e+00 : f32
    %285 = vector.broadcast %cst_57 : f32 to vector<2x64xf32>
    %286 = arith.addf %285, %284 : vector<2x64xf32>
    %287 = arith.divf %285, %286 : vector<2x64xf32>
    %288 = vector.extract_strided_slice %287 {offsets = [0, 0], sizes = [2, 32], strides = [1, 1]} : vector<2x64xf32> to vector<2x32xf32>
    %289 = vector.extract_strided_slice %287 {offsets = [0, 32], sizes = [2, 32], strides = [1, 1]} : vector<2x64xf32> to vector<2x32xf32>
    %290 = vector.extract_strided_slice %277 {offsets = [0, 64], sizes = [2, 32], strides = [1, 1]} : vector<2x96xf32> to vector<2x32xf32>
    %291 = vector.extract_strided_slice %279 {offsets = [0, 64], sizes = [2, 32], strides = [1, 1]} : vector<2x96xf32> to vector<2x32xf32>
    %292 = arith.mulf %288, %291 : vector<2x32xf32>
    %293 = arith.addf %290, %292 : vector<2x32xf32>
    %294 = math.tanh %293 : vector<2x32xf32>
    %cst_58 = arith.constant 1.000000e+00 : f32
    %295 = vector.broadcast %cst_58 : f32 to vector<2x32xf32>
    %296 = arith.subf %295, %289 : vector<2x32xf32>
    %297 = arith.mulf %296, %294 : vector<2x32xf32>
    %298 = arith.mulf %289, %276 : vector<2x32xf32>
    %299 = arith.addf %297, %298 : vector<2x32xf32>
    %300 = vector.extract_strided_slice %203 {offsets = [8, 0], sizes = [2, 96], strides = [1, 1]} : vector<16x96xf32> to vector<2x96xf32>
    %cst_59 = arith.constant dense<0.000000e+00> : vector<2x96xf32>
    %301 = tpu.matmul %299, %198, %cst_59 {dimension_numbers = #tpu.dot_dimension_numbers<[1], [0], [0], [1], [0, 0, 1, 1], [], []>} : vector<2x32xf32>, vector<32x96xf32>, vector<2x96xf32> -> vector<2x96xf32>
    %302 = arith.addf %301, %205 : vector<2x96xf32>
    %303 = vector.extract_strided_slice %300 {offsets = [0, 0], sizes = [2, 64], strides = [1, 1]} : vector<2x96xf32> to vector<2x64xf32>
    %304 = vector.extract_strided_slice %302 {offsets = [0, 0], sizes = [2, 64], strides = [1, 1]} : vector<2x96xf32> to vector<2x64xf32>
    %305 = arith.addf %303, %304 : vector<2x64xf32>
    %306 = arith.negf %305 : vector<2x64xf32>
    %307 = math.exp %306 : vector<2x64xf32>
    %cst_60 = arith.constant 1.000000e+00 : f32
    %308 = vector.broadcast %cst_60 : f32 to vector<2x64xf32>
    %309 = arith.addf %308, %307 : vector<2x64xf32>
    %310 = arith.divf %308, %309 : vector<2x64xf32>
    %311 = vector.extract_strided_slice %310 {offsets = [0, 0], sizes = [2, 32], strides = [1, 1]} : vector<2x64xf32> to vector<2x32xf32>
    %312 = vector.extract_strided_slice %310 {offsets = [0, 32], sizes = [2, 32], strides = [1, 1]} : vector<2x64xf32> to vector<2x32xf32>
    %313 = vector.extract_strided_slice %300 {offsets = [0, 64], sizes = [2, 32], strides = [1, 1]} : vector<2x96xf32> to vector<2x32xf32>
    %314 = vector.extract_strided_slice %302 {offsets = [0, 64], sizes = [2, 32], strides = [1, 1]} : vector<2x96xf32> to vector<2x32xf32>
    %315 = arith.mulf %311, %314 : vector<2x32xf32>
    %316 = arith.addf %313, %315 : vector<2x32xf32>
    %317 = math.tanh %316 : vector<2x32xf32>
    %cst_61 = arith.constant 1.000000e+00 : f32
    %318 = vector.broadcast %cst_61 : f32 to vector<2x32xf32>
    %319 = arith.subf %318, %312 : vector<2x32xf32>
    %320 = arith.mulf %319, %317 : vector<2x32xf32>
    %321 = arith.mulf %312, %299 : vector<2x32xf32>
    %322 = arith.addf %320, %321 : vector<2x32xf32>
    %323 = vector.extract_strided_slice %203 {offsets = [10, 0], sizes = [2, 96], strides = [1, 1]} : vector<16x96xf32> to vector<2x96xf32>
    %cst_62 = arith.constant dense<0.000000e+00> : vector<2x96xf32>
    %324 = tpu.matmul %322, %198, %cst_62 {dimension_numbers = #tpu.dot_dimension_numbers<[1], [0], [0], [1], [0, 0, 1, 1], [], []>} : vector<2x32xf32>, vector<32x96xf32>, vector<2x96xf32> -> vector<2x96xf32>
    %325 = arith.addf %324, %205 : vector<2x96xf32>
    %326 = vector.extract_strided_slice %323 {offsets = [0, 0], sizes = [2, 64], strides = [1, 1]} : vector<2x96xf32> to vector<2x64xf32>
    %327 = vector.extract_strided_slice %325 {offsets = [0, 0], sizes = [2, 64], strides = [1, 1]} : vector<2x96xf32> to vector<2x64xf32>
    %328 = arith.addf %326, %327 : vector<2x64xf32>
    %329 = arith.negf %328 : vector<2x64xf32>
    %330 = math.exp %329 : vector<2x64xf32>
    %cst_63 = arith.constant 1.000000e+00 : f32
    %331 = vector.broadcast %cst_63 : f32 to vector<2x64xf32>
    %332 = arith.addf %331, %330 : vector<2x64xf32>
    %333 = arith.divf %331, %332 : vector<2x64xf32>
    %334 = vector.extract_strided_slice %333 {offsets = [0, 0], sizes = [2, 32], strides = [1, 1]} : vector<2x64xf32> to vector<2x32xf32>
    %335 = vector.extract_strided_slice %333 {offsets = [0, 32], sizes = [2, 32], strides = [1, 1]} : vector<2x64xf32> to vector<2x32xf32>
    %336 = vector.extract_strided_slice %323 {offsets = [0, 64], sizes = [2, 32], strides = [1, 1]} : vector<2x96xf32> to vector<2x32xf32>
    %337 = vector.extract_strided_slice %325 {offsets = [0, 64], sizes = [2, 32], strides = [1, 1]} : vector<2x96xf32> to vector<2x32xf32>
    %338 = arith.mulf %334, %337 : vector<2x32xf32>
    %339 = arith.addf %336, %338 : vector<2x32xf32>
    %340 = math.tanh %339 : vector<2x32xf32>
    %cst_64 = arith.constant 1.000000e+00 : f32
    %341 = vector.broadcast %cst_64 : f32 to vector<2x32xf32>
    %342 = arith.subf %341, %335 : vector<2x32xf32>
    %343 = arith.mulf %342, %340 : vector<2x32xf32>
    %344 = arith.mulf %335, %322 : vector<2x32xf32>
    %345 = arith.addf %343, %344 : vector<2x32xf32>
    %346 = vector.extract_strided_slice %203 {offsets = [12, 0], sizes = [2, 96], strides = [1, 1]} : vector<16x96xf32> to vector<2x96xf32>
    %cst_65 = arith.constant dense<0.000000e+00> : vector<2x96xf32>
    %347 = tpu.matmul %345, %198, %cst_65 {dimension_numbers = #tpu.dot_dimension_numbers<[1], [0], [0], [1], [0, 0, 1, 1], [], []>} : vector<2x32xf32>, vector<32x96xf32>, vector<2x96xf32> -> vector<2x96xf32>
    %348 = arith.addf %347, %205 : vector<2x96xf32>
    %349 = vector.extract_strided_slice %346 {offsets = [0, 0], sizes = [2, 64], strides = [1, 1]} : vector<2x96xf32> to vector<2x64xf32>
    %350 = vector.extract_strided_slice %348 {offsets = [0, 0], sizes = [2, 64], strides = [1, 1]} : vector<2x96xf32> to vector<2x64xf32>
    %351 = arith.addf %349, %350 : vector<2x64xf32>
    %352 = arith.negf %351 : vector<2x64xf32>
    %353 = math.exp %352 : vector<2x64xf32>
    %cst_66 = arith.constant 1.000000e+00 : f32
    %354 = vector.broadcast %cst_66 : f32 to vector<2x64xf32>
    %355 = arith.addf %354, %353 : vector<2x64xf32>
    %356 = arith.divf %354, %355 : vector<2x64xf32>
    %357 = vector.extract_strided_slice %356 {offsets = [0, 0], sizes = [2, 32], strides = [1, 1]} : vector<2x64xf32> to vector<2x32xf32>
    %358 = vector.extract_strided_slice %356 {offsets = [0, 32], sizes = [2, 32], strides = [1, 1]} : vector<2x64xf32> to vector<2x32xf32>
    %359 = vector.extract_strided_slice %346 {offsets = [0, 64], sizes = [2, 32], strides = [1, 1]} : vector<2x96xf32> to vector<2x32xf32>
    %360 = vector.extract_strided_slice %348 {offsets = [0, 64], sizes = [2, 32], strides = [1, 1]} : vector<2x96xf32> to vector<2x32xf32>
    %361 = arith.mulf %357, %360 : vector<2x32xf32>
    %362 = arith.addf %359, %361 : vector<2x32xf32>
    %363 = math.tanh %362 : vector<2x32xf32>
    %cst_67 = arith.constant 1.000000e+00 : f32
    %364 = vector.broadcast %cst_67 : f32 to vector<2x32xf32>
    %365 = arith.subf %364, %358 : vector<2x32xf32>
    %366 = arith.mulf %365, %363 : vector<2x32xf32>
    %367 = arith.mulf %358, %345 : vector<2x32xf32>
    %368 = arith.addf %366, %367 : vector<2x32xf32>
    %369 = vector.extract_strided_slice %203 {offsets = [14, 0], sizes = [2, 96], strides = [1, 1]} : vector<16x96xf32> to vector<2x96xf32>
    %cst_68 = arith.constant dense<0.000000e+00> : vector<2x96xf32>
    %370 = tpu.matmul %368, %198, %cst_68 {dimension_numbers = #tpu.dot_dimension_numbers<[1], [0], [0], [1], [0, 0, 1, 1], [], []>} : vector<2x32xf32>, vector<32x96xf32>, vector<2x96xf32> -> vector<2x96xf32>
    %371 = arith.addf %370, %205 : vector<2x96xf32>
    %372 = vector.extract_strided_slice %369 {offsets = [0, 0], sizes = [2, 64], strides = [1, 1]} : vector<2x96xf32> to vector<2x64xf32>
    %373 = vector.extract_strided_slice %371 {offsets = [0, 0], sizes = [2, 64], strides = [1, 1]} : vector<2x96xf32> to vector<2x64xf32>
    %374 = arith.addf %372, %373 : vector<2x64xf32>
    %375 = arith.negf %374 : vector<2x64xf32>
    %376 = math.exp %375 : vector<2x64xf32>
    %cst_69 = arith.constant 1.000000e+00 : f32
    %377 = vector.broadcast %cst_69 : f32 to vector<2x64xf32>
    %378 = arith.addf %377, %376 : vector<2x64xf32>
    %379 = arith.divf %377, %378 : vector<2x64xf32>
    %380 = vector.extract_strided_slice %379 {offsets = [0, 0], sizes = [2, 32], strides = [1, 1]} : vector<2x64xf32> to vector<2x32xf32>
    %381 = vector.extract_strided_slice %379 {offsets = [0, 32], sizes = [2, 32], strides = [1, 1]} : vector<2x64xf32> to vector<2x32xf32>
    %382 = vector.extract_strided_slice %369 {offsets = [0, 64], sizes = [2, 32], strides = [1, 1]} : vector<2x96xf32> to vector<2x32xf32>
    %383 = vector.extract_strided_slice %371 {offsets = [0, 64], sizes = [2, 32], strides = [1, 1]} : vector<2x96xf32> to vector<2x32xf32>
    %384 = arith.mulf %380, %383 : vector<2x32xf32>
    %385 = arith.addf %382, %384 : vector<2x32xf32>
    %386 = math.tanh %385 : vector<2x32xf32>
    %cst_70 = arith.constant 1.000000e+00 : f32
    %387 = vector.broadcast %cst_70 : f32 to vector<2x32xf32>
    %388 = arith.subf %387, %381 : vector<2x32xf32>
    %389 = arith.mulf %388, %386 : vector<2x32xf32>
    %390 = arith.mulf %381, %368 : vector<2x32xf32>
    %391 = arith.addf %389, %390 : vector<2x32xf32>
    %392 = tpu.concatenate %230, %253, %276, %299, %322, %345, %368, %391 in 0 : vector<2x32xf32>, vector<2x32xf32>, vector<2x32xf32>, vector<2x32xf32>, vector<2x32xf32>, vector<2x32xf32>, vector<2x32xf32>, vector<2x32xf32> -> vector<16x32xf32>
    %393 = vector.shape_cast %195 : vector<2x32xf32> to vector<1x2x32xf32>
    %394 = vector.shape_cast %391 : vector<2x32xf32> to vector<1x2x32xf32>
    %395 = tpu.concatenate %393, %394 in 0 : vector<1x2x32xf32>, vector<1x2x32xf32> -> vector<2x2x32xf32>
    %c0_71 = arith.constant 0 : index
    %c0_72 = arith.constant 0 : index
    %c0_73 = arith.constant 0 : index
    %396 = vector.load %arg16[%c0_71, %c0_72, %c0_73] : memref<2x2x32xf32, #tpu.memory_space<vmem>>, vector<2x2x32xf32>
    tpu.vector_store %arg16[%c0_71, %c0_72, %c0_73], %395 {strides = array<i32>} : memref<2x2x32xf32, #tpu.memory_space<vmem>>, vector<2x2x32xf32>,
    %c0_74 = arith.constant 0 : index
    %c0_75 = arith.constant 0 : index
    %397 = vector.load %arg11[%c0_74, %c0_75] : memref<32x16xf32, #tpu.memory_space<vmem>>, vector<32x16xf32>
    %cst_76 = arith.constant dense<0.000000e+00> : vector<16x16xf32>
    %398 = tpu.matmul %392, %397, %cst_76 {dimension_numbers = #tpu.dot_dimension_numbers<[1], [0], [0], [1], [0, 0, 1, 1], [], []>} : vector<16x32xf32>, vector<32x16xf32>, vector<16x16xf32> -> vector<16x16xf32>
    %c0_77 = arith.constant 0 : index
    %c0_78 = arith.constant 0 : index
    %399 = vector.load %arg12[%c0_77, %c0_78] : memref<1x16xf32, #tpu.memory_space<vmem>>, vector<1x16xf32>
    %400 = vector.broadcast %399 : vector<1x16xf32> to vector<16x16xf32>
    %401 = arith.addf %398, %400 : vector<16x16xf32>
    %cst_79 = arith.constant 0.000000e+00 : f32
    %402 = vector.broadcast %cst_79 : f32 to vector<16x16xf32>
    %403 = arith.maximumf %401, %402 : vector<16x16xf32>
    %c0_80 = arith.constant 0 : index
    %c0_81 = arith.constant 0 : index
    %404 = vector.load %arg13[%c0_80, %c0_81] : memref<16x4xf32, #tpu.memory_space<vmem>>, vector<16x4xf32>
    %cst_82 = arith.constant dense<0.000000e+00> : vector<16x4xf32>
    %405 = tpu.matmul %403, %404, %cst_82 {dimension_numbers = #tpu.dot_dimension_numbers<[1], [0], [0], [1], [0, 0, 1, 1], [], []>} : vector<16x16xf32>, vector<16x4xf32>, vector<16x4xf32> -> vector<16x4xf32>
    %c0_83 = arith.constant 0 : index
    %c0_84 = arith.constant 0 : index
    %406 = vector.load %arg14[%c0_83, %c0_84] : memref<1x4xf32, #tpu.memory_space<vmem>>, vector<1x4xf32>
    %407 = vector.broadcast %406 : vector<1x4xf32> to vector<16x4xf32>
    %408 = arith.addf %405, %407 : vector<16x4xf32>
    %c0_85 = arith.constant 0 : index
    %c0_86 = arith.constant 0 : index
    %409 = vector.load %arg15[%c0_85, %c0_86] : memref<16x4xf32, #tpu.memory_space<vmem>>, vector<16x4xf32>
    tpu.vector_store %arg15[%c0_85, %c0_86], %408 {strides = array<i32>} : memref<16x4xf32, #tpu.memory_space<vmem>>, vector<16x4xf32>,
    return
  }
  func.func @transform_0(%arg0: i32) -> (i32, i32) {
    %c0_i32 = arith.constant 0 : i32
    %c0_i32_0 = arith.constant 0 : i32
    %c0_i32_1 = arith.constant 0 : i32
    return %c0_i32, %c0_i32_0 : i32, i32
  }
  func.func @transform_1(%arg0: i32) -> (i32, i32, i32) {
    %c0_i32 = arith.constant 0 : i32
    %c0_i32_0 = arith.constant 0 : i32
    %c0_i32_1 = arith.constant 0 : i32
    %c0_i32_2 = arith.constant 0 : i32
    return %c0_i32, %c0_i32_0, %c0_i32_1 : i32, i32, i32
  }
  func.func @transform_2(%arg0: i32) -> (i32, i32) {
    %c0_i32 = arith.constant 0 : i32
    %c0_i32_0 = arith.constant 0 : i32
    %c0_i32_1 = arith.constant 0 : i32
    return %c0_i32, %c0_i32_0 : i32, i32
  }
  func.func @transform_3(%arg0: i32) -> (i32, i32) {
    %c0_i32 = arith.constant 0 : i32
    %c0_i32_0 = arith.constant 0 : i32
    %c0_i32_1 = arith.constant 0 : i32
    return %c0_i32, %c0_i32_0 : i32, i32
  }
  func.func @transform_4(%arg0: i32) -> (i32, i32) {
    %c0_i32 = arith.constant 0 : i32
    %c0_i32_0 = arith.constant 0 : i32
    %c0_i32_1 = arith.constant 0 : i32
    return %c0_i32, %c0_i32_0 : i32, i32
  }
  func.func @transform_5(%arg0: i32) -> (i32, i32) {
    %c0_i32 = arith.constant 0 : i32
    %c0_i32_0 = arith.constant 0 : i32
    %c0_i32_1 = arith.constant 0 : i32
    return %c0_i32, %c0_i32_0 : i32, i32
  }
  func.func @transform_6(%arg0: i32) -> (i32, i32) {
    %c0_i32 = arith.constant 0 : i32
    %c0_i32_0 = arith.constant 0 : i32
    %c0_i32_1 = arith.constant 0 : i32
    return %c0_i32, %c0_i32_0 : i32, i32
  }
  func.func @transform_7(%arg0: i32) -> (i32, i32) {
    %c0_i32 = arith.constant 0 : i32
    %c0_i32_0 = arith.constant 0 : i32
    %c0_i32_1 = arith.constant 0 : i32
    return %c0_i32, %c0_i32_0 : i32, i32
  }
  func.func @transform_8(%arg0: i32) -> (i32, i32) {
    %c0_i32 = arith.constant 0 : i32
    %c0_i32_0 = arith.constant 0 : i32
    %c0_i32_1 = arith.constant 0 : i32
    return %c0_i32, %c0_i32_0 : i32, i32
  }
  func.func @transform_9(%arg0: i32) -> (i32, i32) {
    %c0_i32 = arith.constant 0 : i32
    %c0_i32_0 = arith.constant 0 : i32
    %c0_i32_1 = arith.constant 0 : i32
    return %c0_i32, %c0_i32_0 : i32, i32
  }
  func.func @transform_10(%arg0: i32) -> (i32, i32) {
    %c0_i32 = arith.constant 0 : i32
    %c0_i32_0 = arith.constant 0 : i32
    %c0_i32_1 = arith.constant 0 : i32
    return %c0_i32, %c0_i32_0 : i32, i32
  }
  func.func @transform_11(%arg0: i32) -> (i32, i32) {
    %c0_i32 = arith.constant 0 : i32
    %c0_i32_0 = arith.constant 0 : i32
    %c0_i32_1 = arith.constant 0 : i32
    return %c0_i32, %c0_i32_0 : i32, i32
  }
  func.func @transform_12(%arg0: i32) -> (i32, i32) {
    %c0_i32 = arith.constant 0 : i32
    %c0_i32_0 = arith.constant 0 : i32
    %c0_i32_1 = arith.constant 0 : i32
    return %c0_i32, %c0_i32_0 : i32, i32
  }
  func.func @transform_13(%arg0: i32) -> (i32, i32) {
    %c0_i32 = arith.constant 0 : i32
    %c0_i32_0 = arith.constant 0 : i32
    %c0_i32_1 = arith.constant 0 : i32
    return %c0_i32, %c0_i32_0 : i32, i32
  }
  func.func @transform_14(%arg0: i32) -> (i32, i32) {
    %c0_i32 = arith.constant 0 : i32
    %c0_i32_0 = arith.constant 0 : i32
    %c0_i32_1 = arith.constant 0 : i32
    return %c0_i32, %c0_i32_0 : i32, i32
  }
  func.func @transform_15(%arg0: i32) -> (i32, i32, i32) {
    %c0_i32 = arith.constant 0 : i32
    %c0_i32_0 = arith.constant 0 : i32
    %c0_i32_1 = arith.constant 0 : i32
    %c0_i32_2 = arith.constant 0 : i32
    return %c0_i32, %c0_i32_0, %c0_i32_1 : i32, i32, i32
  }
}

</mosaic_0001>

<llo_original>
// kernel: tpu_custom_call.1
$region0: #{tpu_custom_call.1}
  #allocation0 [shape = 'u32[]', space=smem, size = 0x4, offset = 0x4, fixed_abs, tag = 'smem constant byte address 0x4 - core index']
  #allocation1 [shape = 'u32[72,128]{1,0:T(1,128)}', space=vmem, size = 0x9000, scoped, tag = 'internal scratch']
  %s0 = inlined_call_operand.vmem [shape: f32[16,4], index: 0, kind: input, shape index: {}]
  %s1 = inlined_call_operand.vmem [shape: f32[2,2,32], index: 1, kind: input, shape index: {}]
  %s2 = inlined_call_operand.hbm [shape: f32[4,96], index: 2, kind: input, shape index: {}]
  %s3 = inlined_call_operand.vmem [shape: f32[32,96], index: 3, kind: input, shape index: {}]
  %s4 = inlined_call_operand.vmem [shape: f32[1,96], index: 4, kind: input, shape index: {}]
  %s5 = inlined_call_operand.vmem [shape: f32[1,96], index: 5, kind: input, shape index: {}]
  %s6 = inlined_call_operand.vmem [shape: f32[32,96], index: 6, kind: input, shape index: {}]
  %s7 = inlined_call_operand.hbm [shape: f32[32,96], index: 7, kind: input, shape index: {}]
  %s8 = inlined_call_operand.vmem [shape: f32[1,96], index: 8, kind: input, shape index: {}]
  %s9 = inlined_call_operand.vmem [shape: f32[1,96], index: 9, kind: input, shape index: {}]
  %s10 = inlined_call_operand.vmem [shape: f32[32,16], index: 10, kind: input, shape index: {}]
  %s11 = inlined_call_operand.vmem [shape: f32[1,16], index: 11, kind: input, shape index: {}]
  %s12 = inlined_call_operand.vmem [shape: f32[16,4], index: 12, kind: input, shape index: {}]
  %s13 = inlined_call_operand.vmem [shape: f32[1,4], index: 13, kind: input, shape index: {}]
  %s14 = inlined_call_operand.vmem [shape: f32[16,4], index: 14, kind: output, shape index: {0}]
  %s15 = inlined_call_operand.hbm [shape: f32[2,2,32], index: 15, kind: output, shape index: {1}]
  %16 = xla_tuple %s14, %s15
  %s17 = sld [smem:[#allocation0]]
  $region82: #{tpu_custom_call.1} parent=0
    _
  %s19 = ssub.s32 1, %s17
  %s20 = scalar_select 0, %s19, %s17
  $region1: #{tpu_custom_call.1} parent=0
    #allocation2 [shape = 'u8[2048]{0}', space=vmem, size = 0x800, scoped, tag = 'input window, operand 2, single buffered']
    #allocation3 [shape = 's32[1]{0}', space=sflag, size = 0x4, scoped, tag = 'scoped memory for tpu_custom_call.1']
    #allocation4 [shape = 's32[1]{0}', space=sflag, size = 0x4, scoped, tag = 'scoped memory for tpu_custom_call.1']
    #allocation5 [shape = 'u8[16384]{0}', space=vmem, size = 0x4000, scoped, tag = 'input window, operand 7, single buffered']
    #allocation6 [shape = 's32[1]{0}', space=sflag, size = 0x4, scoped, tag = 'scoped memory for tpu_custom_call.1']
    #allocation7 [shape = 'u8[2048]{0}', space=vmem, size = 0x800, scoped, tag = 'output window, operand 1, single buffered']
    %21 = vsyncpa [#allocation3], 0
    %22 = vsyncpa [#allocation6], 0
    %23 = vsyncpa [#allocation4], 0
    // Predicated region
    $region2: #{tpu_custom_call.1} parent=1 // pred_check
      _
    $region3: #{tpu_custom_call.1} parent=1 // pred_check_branch
      %25 = sbr.rel (0) target = $region5
    $region4: #{tpu_custom_call.1} parent=1 // pred_region
      _
    $region5: #{tpu_custom_call.1} parent=1 // pred_fallthru
      _
    // Predicated region
    $region6: #{tpu_custom_call.1} parent=1 // pred_check
      _
    $region7: #{tpu_custom_call.1} parent=1 // pred_check_branch
      %27 = sbr.rel (0) target = $region9
    $region8: #{tpu_custom_call.1} parent=1 // pred_region
      _
    $region9: #{tpu_custom_call.1} parent=1 // pred_fallthru
      _
    // Predicated region
    $region10: #{tpu_custom_call.1} parent=1 // pred_check
      _
    $region11: #{tpu_custom_call.1} parent=1 // pred_check_branch
      %29 = sbr.rel (0) target = $region13
    $region12: #{tpu_custom_call.1} parent=1 // pred_region
      %31 = vsyncadd [#allocation3], 0
      %s33 = sshll.u32 %s2, 4
      %s34 = int_to_ptr.hbm [resolvable:$true] %s33
      %s35 = sshll.u32 [#allocation2], 4
      %s36 = int_to_ptr.vmem [resolvable:$true] %s35
      %38 = dma.hbm_to_vmem [thread:$0]  %s34, 64, %s36, [#allocation3]
    $region13: #{tpu_custom_call.1} parent=1 // pred_fallthru
      _
    // Predicated region
    $region14: #{tpu_custom_call.1} parent=1 // pred_check
      _
    $region15: #{tpu_custom_call.1} parent=1 // pred_check_branch
      %40 = sbr.rel (0) target = $region17
    $region16: #{tpu_custom_call.1} parent=1 // pred_region
      _
    $region17: #{tpu_custom_call.1} parent=1 // pred_fallthru
      _
    // Predicated region
    $region18: #{tpu_custom_call.1} parent=1 // pred_check
      _
    $region19: #{tpu_custom_call.1} parent=1 // pred_check_branch
      %42 = sbr.rel (0) target = $region21
    $region20: #{tpu_custom_call.1} parent=1 // pred_region
      _
    $region21: #{tpu_custom_call.1} parent=1 // pred_fallthru
      _
    // Predicated region
    $region22: #{tpu_custom_call.1} parent=1 // pred_check
      _
    $region23: #{tpu_custom_call.1} parent=1 // pred_check_branch
      %44 = sbr.rel (0) target = $region25
    $region24: #{tpu_custom_call.1} parent=1 // pred_region
      _
    $region25: #{tpu_custom_call.1} parent=1 // pred_fallthru
      _
    // Predicated region
    $region26: #{tpu_custom_call.1} parent=1 // pred_check
      _
    $region27: #{tpu_custom_call.1} parent=1 // pred_check_branch
      %46 = sbr.rel (0) target = $region29
    $region28: #{tpu_custom_call.1} parent=1 // pred_region
      _
    $region29: #{tpu_custom_call.1} parent=1 // pred_fallthru
      _
    // Predicated region
    $region30: #{tpu_custom_call.1} parent=1 // pred_check
      _
    $region31: #{tpu_custom_call.1} parent=1 // pred_check_branch
      %48 = sbr.rel (0) target = $region33
    $region32: #{tpu_custom_call.1} parent=1 // pred_region
      %50 = vsyncadd [#allocation6], 0
      %s51 = sshll.u32 %s7, 4
      %s52 = int_to_ptr.hbm [resolvable:$true] %s51
      %s53 = sshll.u32 [#allocation5], 4
      %s54 = int_to_ptr.vmem [resolvable:$true] %s53
      %59 = dma.hbm_to_vmem [thread:$0]  %s52, 512, %s54, [#allocation6], 128, 128, 8
    $region33: #{tpu_custom_call.1} parent=1 // pred_fallthru
      _
    // Predicated region
    $region34: #{tpu_custom_call.1} parent=1 // pred_check
      _
    $region35: #{tpu_custom_call.1} parent=1 // pred_check_branch
      %61 = sbr.rel (0) target = $region37
    $region36: #{tpu_custom_call.1} parent=1 // pred_region
      _
    $region37: #{tpu_custom_call.1} parent=1 // pred_fallthru
      _
    // Predicated region
    $region38: #{tpu_custom_call.1} parent=1 // pred_check
      _
    $region39: #{tpu_custom_call.1} parent=1 // pred_check_branch
      %63 = sbr.rel (0) target = $region41
    $region40: #{tpu_custom_call.1} parent=1 // pred_region
      _
    $region41: #{tpu_custom_call.1} parent=1 // pred_fallthru
      _
    // Predicated region
    $region42: #{tpu_custom_call.1} parent=1 // pred_check
      _
    $region43: #{tpu_custom_call.1} parent=1 // pred_check_branch
      %65 = sbr.rel (0) target = $region45
    $region44: #{tpu_custom_call.1} parent=1 // pred_region
      _
    $region45: #{tpu_custom_call.1} parent=1 // pred_fallthru
      _
    // Predicated region
    $region46: #{tpu_custom_call.1} parent=1 // pred_check
      _
    $region47: #{tpu_custom_call.1} parent=1 // pred_check_branch
      %67 = sbr.rel (0) target = $region49
    $region48: #{tpu_custom_call.1} parent=1 // pred_region
      _
    $region49: #{tpu_custom_call.1} parent=1 // pred_fallthru
      _
    // Predicated region
    $region50: #{tpu_custom_call.1} parent=1 // pred_check
      _
    $region51: #{tpu_custom_call.1} parent=1 // pred_check_branch
      %69 = sbr.rel (0) target = $region53
    $region52: #{tpu_custom_call.1} parent=1 // pred_region
      _
    $region53: #{tpu_custom_call.1} parent=1 // pred_fallthru
      _
    // Predicated region
    $region54: #{tpu_custom_call.1} parent=1 // pred_check
      _
    $region55: #{tpu_custom_call.1} parent=1 // pred_check_branch
      %71 = sbr.rel (0) target = $region57
    $region56: #{tpu_custom_call.1} parent=1 // pred_region
      _
    $region57: #{tpu_custom_call.1} parent=1 // pred_fallthru
      _
    // Predicated region
    $region58: #{tpu_custom_call.1} parent=1 // pred_check
      _
    $region59: #{tpu_custom_call.1} parent=1 // pred_check_branch
      %73 = sbr.rel (0) target = $region61
    $region60: #{tpu_custom_call.1} parent=1 // pred_region
      %75 = dma.done [#allocation3], 64
    $region61: #{tpu_custom_call.1} parent=1 // pred_fallthru
      _
    // Predicated region
    $region62: #{tpu_custom_call.1} parent=1 // pred_check
      _
    $region63: #{tpu_custom_call.1} parent=1 // pred_check_branch
      %77 = sbr.rel (0) target = $region65
    $region64: #{tpu_custom_call.1} parent=1 // pred_region
      %79 = dma.done [#allocation6], 512
    $region65: #{tpu_custom_call.1} parent=1 // pred_fallthru
      _
    %v80 = vld [vmem:[%s0] sm:$0xff]
    %v81 = vld [vmem:[%s0 + $0x8] sm:$0xff]
    %v82 = vld [vmem:[#allocation2] sm:$0xf]
    %v83 = vld [vmem:[%s3] sm:$0xff]
    %v84 = vld [vmem:[%s3 + $0x8] sm:$0xff]
    %v85 = vld [vmem:[%s3 + $0x10] sm:$0xff]
    %v86 = vld [vmem:[%s3 + $0x18] sm:$0xff]
    %v87 = vld [vmem:[%s4] sm:$0x1]
    %v88 = vld [vmem:[%s5] sm:$0x1]
    %v90 = vperm.slane %v87, 0
    %vm92 = vcmask 31744
    %v94 = vsel %vm92, %v80, 0
    %v97 = vsel %vm92, %v81, 0
    %vm99 = vcmask 1043456
    %v101 = vsel %vm99, %v82, 0
    %103 = vmatpush.msra.mxu0 0.0
    %104 = vmatpush.msra.mxu0 0.0
    %105 = vmatpush.msra.mxu0 0.0
    %106 = vmatpush.msra.mxu0 0.0
    %107 = vmatpush.msra.mxu0 0.0
    %108 = vmatpush.msra.mxu0 0.0
    %109 = vmatpush.msra.mxu0 0.0
    %110 = vmatpush.msra.mxu0 0.0
    %111 = vmatpush.msra.mxu0 0.0
    %112 = vmatpush.msra.mxu0 0.0
    %113 = vmatpush.msra.mxu0 0.0
    %114 = vmatpush.msra.mxu0 0.0
    %115 = vmatpush.msra.mxu0 0.0
    %116 = vmatpush.msra.mxu0 0.0
    %117 = vmatpush.msra.mxu0 0.0
    %118 = vmatpush.msra.mxu0 %v101
    %119 = vmatmul.f32.gmra.mxu0 %v94
    %v120 = vpop.f32.mrf.mxu0
    %v121 = vadd.f32 %v90, %v120
    %122 = vmatmul.f32.gmra.mxu0 %v97
    %v123 = vpop.f32.mrf.mxu0
    %v124 = vadd.f32 %v90, %v123
    %125 = vdwg.mxu0
    %v127 = vperm.slane %v88, 0
    %v129 = vld [vmem:[%s1] sm:$0x3]
    %vm130 = vcmask 261120
    %v132 = vsel %vm130, %v129, 0
    %134 = vmatpush.msra.mxu0 0.0
    %135 = vmatpush.msra.mxu0 0.0
    %136 = vmatpush.msra.mxu0 0.0
    %137 = vmatpush.msra.mxu0 0.0
    %138 = vmatpush.msra.mxu0 0.0
    %139 = vmatpush.msra.mxu0 0.0
    %140 = vmatpush.msra.mxu0 0.0
    %141 = vmatpush.msra.mxu0 0.0
    %142 = vmatpush.msra.mxu0 0.0
    %143 = vmatpush.msra.mxu0 0.0
    %144 = vmatpush.msra.mxu0 0.0
    %145 = vmatpush.msra.mxu0 0.0
    %146 = vmatpush.msra.mxu0 %v86
    %147 = vmatpush.msra.mxu0 %v85
    %148 = vmatpush.msra.mxu0 %v84
    %149 = vmatpush.msra.mxu0 %v83
    %150 = vmatmul.f32.gmra.mxu0 %v132
    %v151 = vpop.f32.mrf.mxu0
    %v152 = vadd.f32 %v127, %v151
    %153 = vdwg.mxu0
    %v154 = vadd.f32 %v121, %v152
    %v155 = vxor.u32 %v154, 2147483648
    %v156 = vmul.f32 %v155, 1.442695
    %v157 = vpow.pop %v156
    %v158 = vadd.f32 %v157, 1.0
    %v159 = vrcp.pop %v158
    %v160 = vmul.f32 %v158, %v159
    %v161 = vsub.f32 1.0, %v160
    %v162 = vmul.f32 %v159, %v161
    %v163 = vadd.f32 %v159, %v162
    %vm164 = vweird.f32 %v158
    %vm165 = vweird.f32 %v159
    %vm166 = vmor %vm164, %vm165
    %v167 = vsel %vm166, %v159, %v163
    %v168 = vand.u32 2147483647, %v158
    %vm169 = vcmp.eq.f32.partialorder %v168, 8.507059e+37
    %v170 = vand.u32 %v158, 2147483648
    %v171 = vor.u32 1.1754944e-38, %v170
    %v172 = vsel %vm169, %v171, %v167
    %v173 = vmul.f32 1.0, %v172
    %175 = vrot.lane.b32.xlu0 %v152, 64
    %v176 = vpop.permute.xlu0 %175
    %v178 = vmul.f32 %v173, %v176
    %180 = vrot.lane.b32.xlu0 %v178, 64
    %v181 = vpop.permute.xlu0 %180
    %v183 = vadd.f32 %v121, %v181
    %v184 = vtanh.pop %v183
    %v185 = vsub.f32 1.0, %v173
    %187 = vrot.lane.b32.xlu0 %v184, 96
    %v188 = vpop.permute.xlu0 %187
    %v190 = vmul.f32 %v185, %v188
    %191 = vrot.lane.b32.xlu0 %v129, 32
    %v192 = vpop.permute.xlu0 %191
    %v194 = vmul.f32 %v173, %v192
    %v195 = vadd.f32 %v190, %v194
    %197 = vrot.lane.b32.xlu0 %v195, 96
    %v198 = vpop.permute.xlu0 %197
    %v199 = vsel %vm130, %v198, 0
    %201 = vmatpush.msra.mxu0 0.0
    %202 = vmatpush.msra.mxu0 0.0
    %203 = vmatpush.msra.mxu0 0.0
    %204 = vmatpush.msra.mxu0 0.0
    %205 = vmatpush.msra.mxu0 0.0
    %206 = vmatpush.msra.mxu0 0.0
    %207 = vmatpush.msra.mxu0 0.0
    %208 = vmatpush.msra.mxu0 0.0
    %209 = vmatpush.msra.mxu0 0.0
    %210 = vmatpush.msra.mxu0 0.0
    %211 = vmatpush.msra.mxu0 0.0
    %212 = vmatpush.msra.mxu0 0.0
    %213 = vmatpush.msra.mxu0 %v86
    %214 = vmatpush.msra.mxu0 %v85
    %215 = vmatpush.msra.mxu0 %v84
    %216 = vmatpush.msra.mxu0 %v83
    %217 = vmatmul.f32.gmra.mxu0 %v199
    %v218 = vpop.f32.mrf.mxu0
    %v219 = vadd.f32 %v127, %v218
    %220 = vdwg.mxu0
    %v222 = vrot.slane %v219, 6
    %v224 = vadd.f32 %v121, %v222
    %v225 = vxor.u32 %v224, 2147483648
    %v226 = vmul.f32 %v225, 1.442695
    %v227 = vpow.pop %v226
    %v228 = vadd.f32 %v227, 1.0
    %v229 = vrcp.pop %v228
    %v230 = vmul.f32 %v228, %v229
    %v231 = vsub.f32 1.0, %v230
    %v232 = vmul.f32 %v229, %v231
    %v233 = vadd.f32 %v229, %v232
    %vm234 = vweird.f32 %v228
    %vm235 = vweird.f32 %v229
    %vm236 = vmor %vm234, %vm235
    %v237 = vsel %vm236, %v229, %v233
    %v238 = vand.u32 2147483647, %v228
    %vm239 = vcmp.eq.f32.partialorder %v238, 8.507059e+37
    %v240 = vand.u32 %v228, 2147483648
    %v241 = vor.u32 1.1754944e-38, %v240
    %v242 = vsel %vm239, %v241, %v237
    %v243 = vmul.f32 1.0, %v242
    %244 = vrot.lane.b32.xlu0 %v222, 64
    %v245 = vpop.permute.xlu0 %244
    %v247 = vmul.f32 %v243, %v245
    %249 = vrot.lane.b32.xlu0 %v247, 64
    %v250 = vpop.permute.xlu0 %249
    %v252 = vadd.f32 %v121, %v250
    %v253 = vtanh.pop %v252
    %v254 = vsub.f32 1.0, %v243
    %256 = vrot.lane.b32.xlu0 %v253, 96
    %v257 = vpop.permute.xlu0 %256
    %v259 = vmul.f32 %v254, %v257
    %v260 = vrot.slane %v195, 6
    %v262 = vmul.f32 %v243, %v260
    %v263 = vadd.f32 %v259, %v262
    %v265 = vrot.slane %v263, 2
    %266 = vrot.lane.b32.xlu0 %v265, 96
    %v267 = vpop.permute.xlu0 %266
    %v268 = vsel %vm130, %v267, 0
    %270 = vmatpush.msra.mxu0 0.0
    %271 = vmatpush.msra.mxu0 0.0
    %272 = vmatpush.msra.mxu0 0.0
    %273 = vmatpush.msra.mxu0 0.0
    %274 = vmatpush.msra.mxu0 0.0
    %275 = vmatpush.msra.mxu0 0.0
    %276 = vmatpush.msra.mxu0 0.0
    %277 = vmatpush.msra.mxu0 0.0
    %278 = vmatpush.msra.mxu0 0.0
    %279 = vmatpush.msra.mxu0 0.0
    %280 = vmatpush.msra.mxu0 0.0
    %281 = vmatpush.msra.mxu0 0.0
    %282 = vmatpush.msra.mxu0 %v86
    %283 = vmatpush.msra.mxu0 %v85
    %284 = vmatpush.msra.mxu0 %v84
    %285 = vmatpush.msra.mxu0 %v83
    %286 = vmatmul.f32.gmra.mxu0 %v268
    %v287 = vpop.f32.mrf.mxu0
    %v288 = vadd.f32 %v127, %v287
    %289 = vdwg.mxu0
    %v291 = vrot.slane %v288, 4
    %v293 = vadd.f32 %v121, %v291
    %v294 = vxor.u32 %v293, 2147483648
    %v295 = vmul.f32 %v294, 1.442695
    %v296 = vpow.pop %v295
    %v297 = vadd.f32 %v296, 1.0
    %v298 = vrcp.pop %v297
    %v299 = vmul.f32 %v297, %v298
    %v300 = vsub.f32 1.0, %v299
    %v301 = vmul.f32 %v298, %v300
    %v302 = vadd.f32 %v298, %v301
    %vm303 = vweird.f32 %v297
    %vm304 = vweird.f32 %v298
    %vm305 = vmor %vm303, %vm304
    %v306 = vsel %vm305, %v298, %v302
    %v307 = vand.u32 2147483647, %v297
    %vm308 = vcmp.eq.f32.partialorder %v307, 8.507059e+37
    %v309 = vand.u32 %v297, 2147483648
    %v310 = vor.u32 1.1754944e-38, %v309
    %v311 = vsel %vm308, %v310, %v306
    %v312 = vmul.f32 1.0, %v311
    %313 = vrot.lane.b32.xlu0 %v291, 64
    %v314 = vpop.permute.xlu0 %313
    %v316 = vmul.f32 %v312, %v314
    %318 = vrot.lane.b32.xlu0 %v316, 64
    %v319 = vpop.permute.xlu0 %318
    %v321 = vadd.f32 %v121, %v319
    %v322 = vtanh.pop %v321
    %v323 = vsub.f32 1.0, %v312
    %325 = vrot.lane.b32.xlu0 %v322, 96
    %v326 = vpop.permute.xlu0 %325
    %v328 = vmul.f32 %v323, %v326
    %v329 = vrot.slane %v263, 6
    %v331 = vmul.f32 %v312, %v329
    %v332 = vadd.f32 %v328, %v331
    %v334 = vrot.slane %v332, 4
    %335 = vrot.lane.b32.xlu0 %v334, 96
    %v336 = vpop.permute.xlu0 %335
    %v337 = vsel %vm130, %v336, 0
    %339 = vmatpush.msra.mxu0 0.0
    %340 = vmatpush.msra.mxu0 0.0
    %341 = vmatpush.msra.mxu0 0.0
    %342 = vmatpush.msra.mxu0 0.0
    %343 = vmatpush.msra.mxu0 0.0
    %344 = vmatpush.msra.mxu0 0.0
    %345 = vmatpush.msra.mxu0 0.0
    %346 = vmatpush.msra.mxu0 0.0
    %347 = vmatpush.msra.mxu0 0.0
    %348 = vmatpush.msra.mxu0 0.0
    %349 = vmatpush.msra.mxu0 0.0
    %350 = vmatpush.msra.mxu0 0.0
    %351 = vmatpush.msra.mxu0 %v86
    %352 = vmatpush.msra.mxu0 %v85
    %353 = vmatpush.msra.mxu0 %v84
    %354 = vmatpush.msra.mxu0 %v83
    %355 = vmatmul.f32.gmra.mxu0 %v337
    %v356 = vpop.f32.mrf.mxu0
    %v357 = vadd.f32 %v127, %v356
    %358 = vdwg.mxu0
    %v360 = vrot.slane %v357, 2
    %v362 = vadd.f32 %v121, %v360
    %v363 = vxor.u32 %v362, 2147483648
    %v364 = vmul.f32 %v363, 1.442695
    %v365 = vpow.pop %v364
    %v366 = vadd.f32 %v365, 1.0
    %v367 = vrcp.pop %v366
    %v368 = vmul.f32 %v366, %v367
    %v369 = vsub.f32 1.0, %v368
    %v370 = vmul.f32 %v367, %v369
    %v371 = vadd.f32 %v367, %v370
    %vm372 = vweird.f32 %v366
    %vm373 = vweird.f32 %v367
    %vm374 = vmor %vm372, %vm373
    %v375 = vsel %vm374, %v367, %v371
    %v376 = vand.u32 2147483647, %v366
    %vm377 = vcmp.eq.f32.partialorder %v376, 8.507059e+37
    %v378 = vand.u32 %v366, 2147483648
    %v379 = vor.u32 1.1754944e-38, %v378
    %v380 = vsel %vm377, %v379, %v375
    %v381 = vmul.f32 1.0, %v380
    %382 = vrot.lane.b32.xlu0 %v360, 64
    %v383 = vpop.permute.xlu0 %382
    %v385 = vmul.f32 %v381, %v383
    %387 = vrot.lane.b32.xlu0 %v385, 64
    %v388 = vpop.permute.xlu0 %387
    %v390 = vadd.f32 %v121, %v388
    %v391 = vtanh.pop %v390
    %v392 = vsub.f32 1.0, %v381
    %394 = vrot.lane.b32.xlu0 %v391, 96
    %v395 = vpop.permute.xlu0 %394
    %v397 = vmul.f32 %v392, %v395
    %v398 = vrot.slane %v332, 6
    %v400 = vmul.f32 %v381, %v398
    %v401 = vadd.f32 %v397, %v400
    %v403 = vrot.slane %v401, 6
    %404 = vrot.lane.b32.xlu0 %v403, 96
    %v405 = vpop.permute.xlu0 %404
    %v406 = vsel %vm130, %v405, 0
    %408 = vmatpush.msra.mxu0 0.0
    %409 = vmatpush.msra.mxu0 0.0
    %410 = vmatpush.msra.mxu0 0.0
    %411 = vmatpush.msra.mxu0 0.0
    %412 = vmatpush.msra.mxu0 0.0
    %413 = vmatpush.msra.mxu0 0.0
    %414 = vmatpush.msra.mxu0 0.0
    %415 = vmatpush.msra.mxu0 0.0
    %416 = vmatpush.msra.mxu0 0.0
    %417 = vmatpush.msra.mxu0 0.0
    %418 = vmatpush.msra.mxu0 0.0
    %419 = vmatpush.msra.mxu0 0.0
    %420 = vmatpush.msra.mxu0 %v86
    %421 = vmatpush.msra.mxu0 %v85
    %422 = vmatpush.msra.mxu0 %v84
    %423 = vmatpush.msra.mxu0 %v83
    %424 = vmatmul.f32.gmra.mxu0 %v406
    %v425 = vpop.f32.mrf.mxu0
    %v426 = vadd.f32 %v127, %v425
    %427 = vdwg.mxu0
    %v428 = vadd.f32 %v124, %v426
    %v429 = vxor.u32 %v428, 2147483648
    %v430 = vmul.f32 %v429, 1.442695
    %v431 = vpow.pop %v430
    %v432 = vadd.f32 %v431, 1.0
    %v433 = vrcp.pop %v432
    %v434 = vmul.f32 %v432, %v433
    %v435 = vsub.f32 1.0, %v434
    %v436 = vmul.f32 %v433, %v435
    %v437 = vadd.f32 %v433, %v436
    %vm438 = vweird.f32 %v432
    %vm439 = vweird.f32 %v433
    %vm440 = vmor %vm438, %vm439
    %v441 = vsel %vm440, %v433, %v437
    %v442 = vand.u32 2147483647, %v432
    %vm443 = vcmp.eq.f32.partialorder %v442, 8.507059e+37
    %v444 = vand.u32 %v432, 2147483648
    %v445 = vor.u32 1.1754944e-38, %v444
    %v446 = vsel %vm443, %v445, %v441
    %v447 = vmul.f32 1.0, %v446
    %449 = vrot.lane.b32.xlu0 %v426, 64
    %v450 = vpop.permute.xlu0 %449
    %v452 = vmul.f32 %v447, %v450
    %454 = vrot.lane.b32.xlu0 %v452, 64
    %v455 = vpop.permute.xlu0 %454
    %v457 = vadd.f32 %v124, %v455
    %v458 = vtanh.pop %v457
    %v459 = vsub.f32 1.0, %v447
    %461 = vrot.lane.b32.xlu0 %v458, 96
    %v462 = vpop.permute.xlu0 %461
    %v464 = vmul.f32 %v459, %v462
    %v466 = vmul.f32 %v447, %v403
    %v467 = vadd.f32 %v464, %v466
    %469 = vrot.lane.b32.xlu0 %v467, 96
    %v470 = vpop.permute.xlu0 %469
    %v471 = vsel %vm130, %v470, 0
    %473 = vmatpush.msra.mxu0 0.0
    %474 = vmatpush.msra.mxu0 0.0
    %475 = vmatpush.msra.mxu0 0.0
    %476 = vmatpush.msra.mxu0 0.0
    %477 = vmatpush.msra.mxu0 0.0
    %478 = vmatpush.msra.mxu0 0.0
    %479 = vmatpush.msra.mxu0 0.0
    %480 = vmatpush.msra.mxu0 0.0
    %481 = vmatpush.msra.mxu0 0.0
    %482 = vmatpush.msra.mxu0 0.0
    %483 = vmatpush.msra.mxu0 0.0
    %484 = vmatpush.msra.mxu0 0.0
    %485 = vmatpush.msra.mxu0 %v86
    %486 = vmatpush.msra.mxu0 %v85
    %487 = vmatpush.msra.mxu0 %v84
    %488 = vmatpush.msra.mxu0 %v83
    %489 = vmatmul.f32.gmra.mxu0 %v471
    %v490 = vpop.f32.mrf.mxu0
    %v491 = vadd.f32 %v127, %v490
    %492 = vdwg.mxu0
    %v494 = vrot.slane %v491, 6
    %v496 = vadd.f32 %v124, %v494
    %v497 = vxor.u32 %v496, 2147483648
    %v498 = vmul.f32 %v497, 1.442695
    %v499 = vpow.pop %v498
    %v500 = vadd.f32 %v499, 1.0
    %v501 = vrcp.pop %v500
    %v502 = vmul.f32 %v500, %v501
    %v503 = vsub.f32 1.0, %v502
    %v504 = vmul.f32 %v501, %v503
    %v505 = vadd.f32 %v501, %v504
    %vm506 = vweird.f32 %v500
    %vm507 = vweird.f32 %v501
    %vm508 = vmor %vm506, %vm507
    %v509 = vsel %vm508, %v501, %v505
    %v510 = vand.u32 2147483647, %v500
    %vm511 = vcmp.eq.f32.partialorder %v510, 8.507059e+37
    %v512 = vand.u32 %v500, 2147483648
    %v513 = vor.u32 1.1754944e-38, %v512
    %v514 = vsel %vm511, %v513, %v509
    %v515 = vmul.f32 1.0, %v514
    %516 = vrot.lane.b32.xlu0 %v494, 64
    %v517 = vpop.permute.xlu0 %516
    %v519 = vmul.f32 %v515, %v517
    %521 = vrot.lane.b32.xlu0 %v519, 64
    %v522 = vpop.permute.xlu0 %521
    %v524 = vadd.f32 %v124, %v522
    %v525 = vtanh.pop %v524
    %v526 = vsub.f32 1.0, %v515
    %528 = vrot.lane.b32.xlu0 %v525, 96
    %v529 = vpop.permute.xlu0 %528
    %v531 = vmul.f32 %v526, %v529
    %v532 = vrot.slane %v467, 6
    %v534 = vmul.f32 %v515, %v532
    %v535 = vadd.f32 %v531, %v534
    %v537 = vrot.slane %v535, 2
    %538 = vrot.lane.b32.xlu0 %v537, 96
    %v539 = vpop.permute.xlu0 %538
    %v540 = vsel %vm130, %v539, 0
    %542 = vmatpush.msra.mxu0 0.0
    %543 = vmatpush.msra.mxu0 0.0
    %544 = vmatpush.msra.mxu0 0.0
    %545 = vmatpush.msra.mxu0 0.0
    %546 = vmatpush.msra.mxu0 0.0
    %547 = vmatpush.msra.mxu0 0.0
    %548 = vmatpush.msra.mxu0 0.0
    %549 = vmatpush.msra.mxu0 0.0
    %550 = vmatpush.msra.mxu0 0.0
    %551 = vmatpush.msra.mxu0 0.0
    %552 = vmatpush.msra.mxu0 0.0
    %553 = vmatpush.msra.mxu0 0.0
    %554 = vmatpush.msra.mxu0 %v86
    %555 = vmatpush.msra.mxu0 %v85
    %556 = vmatpush.msra.mxu0 %v84
    %557 = vmatpush.msra.mxu0 %v83
    %558 = vmatmul.f32.gmra.mxu0 %v540
    %v559 = vpop.f32.mrf.mxu0
    %v560 = vadd.f32 %v127, %v559
    %561 = vdwg.mxu0
    %v563 = vrot.slane %v560, 4
    %v565 = vadd.f32 %v124, %v563
    %v566 = vxor.u32 %v565, 2147483648
    %v567 = vmul.f32 %v566, 1.442695
    %v568 = vpow.pop %v567
    %v569 = vadd.f32 %v568, 1.0
    %v570 = vrcp.pop %v569
    %v571 = vmul.f32 %v569, %v570
    %v572 = vsub.f32 1.0, %v571
    %v573 = vmul.f32 %v570, %v572
    %v574 = vadd.f32 %v570, %v573
    %vm575 = vweird.f32 %v569
    %vm576 = vweird.f32 %v570
    %vm577 = vmor %vm575, %vm576
    %v578 = vsel %vm577, %v570, %v574
    %v579 = vand.u32 2147483647, %v569
    %vm580 = vcmp.eq.f32.partialorder %v579, 8.507059e+37
    %v581 = vand.u32 %v569, 2147483648
    %v582 = vor.u32 1.1754944e-38, %v581
    %v583 = vsel %vm580, %v582, %v578
    %v584 = vmul.f32 1.0, %v583
    %585 = vrot.lane.b32.xlu0 %v563, 64
    %v586 = vpop.permute.xlu0 %585
    %v588 = vmul.f32 %v584, %v586
    %590 = vrot.lane.b32.xlu0 %v588, 64
    %v591 = vpop.permute.xlu0 %590
    %v593 = vadd.f32 %v124, %v591
    %v594 = vtanh.pop %v593
    %v595 = vsub.f32 1.0, %v584
    %597 = vrot.lane.b32.xlu0 %v594, 96
    %v598 = vpop.permute.xlu0 %597
    %v600 = vmul.f32 %v595, %v598
    %v601 = vrot.slane %v535, 6
    %v603 = vmul.f32 %v584, %v601
    %v604 = vadd.f32 %v600, %v603
    %v606 = vrot.slane %v604, 4
    %607 = vrot.lane.b32.xlu0 %v606, 96
    %v608 = vpop.permute.xlu0 %607
    %v609 = vsel %vm130, %v608, 0
    %611 = vmatpush.msra.mxu0 0.0
    %612 = vmatpush.msra.mxu0 0.0
    %613 = vmatpush.msra.mxu0 0.0
    %614 = vmatpush.msra.mxu0 0.0
    %615 = vmatpush.msra.mxu0 0.0
    %616 = vmatpush.msra.mxu0 0.0
    %617 = vmatpush.msra.mxu0 0.0
    %618 = vmatpush.msra.mxu0 0.0
    %619 = vmatpush.msra.mxu0 0.0
    %620 = vmatpush.msra.mxu0 0.0
    %621 = vmatpush.msra.mxu0 0.0
    %622 = vmatpush.msra.mxu0 0.0
    %623 = vmatpush.msra.mxu0 %v86
    %624 = vmatpush.msra.mxu0 %v85
    %625 = vmatpush.msra.mxu0 %v84
    %626 = vmatpush.msra.mxu0 %v83
    %627 = vmatmul.f32.gmra.mxu0 %v609
    %v628 = vpop.f32.mrf.mxu0
    %v629 = vadd.f32 %v127, %v628
    %630 = vdwg.mxu0
    %v632 = vrot.slane %v629, 2
    %v634 = vadd.f32 %v124, %v632
    %v635 = vxor.u32 %v634, 2147483648
    %v636 = vmul.f32 %v635, 1.442695
    %v637 = vpow.pop %v636
    %v638 = vadd.f32 %v637, 1.0
    %v639 = vrcp.pop %v638
    %v640 = vmul.f32 %v638, %v639
    %v641 = vsub.f32 1.0, %v640
    %v642 = vmul.f32 %v639, %v641
    %v643 = vadd.f32 %v639, %v642
    %vm644 = vweird.f32 %v638
    %vm645 = vweird.f32 %v639
    %vm646 = vmor %vm644, %vm645
    %v647 = vsel %vm646, %v639, %v643
    %v648 = vand.u32 2147483647, %v638
    %vm649 = vcmp.eq.f32.partialorder %v648, 8.507059e+37
    %v650 = vand.u32 %v638, 2147483648
    %v651 = vor.u32 1.1754944e-38, %v650
    %v652 = vsel %vm649, %v651, %v647
    %v653 = vmul.f32 1.0, %v652
    %654 = vrot.lane.b32.xlu0 %v632, 64
    %v655 = vpop.permute.xlu0 %654
    %v657 = vmul.f32 %v653, %v655
    %659 = vrot.lane.b32.xlu0 %v657, 64
    %v660 = vpop.permute.xlu0 %659
    %v662 = vadd.f32 %v124, %v660
    %v663 = vtanh.pop %v662
    %v664 = vsub.f32 1.0, %v653
    %666 = vrot.lane.b32.xlu0 %v663, 96
    %v667 = vpop.permute.xlu0 %666
    %v669 = vmul.f32 %v664, %v667
    %v670 = vrot.slane %v604, 6
    %v672 = vmul.f32 %v653, %v670
    %v673 = vadd.f32 %v669, %v672
    %vm674 = vcmask 1041408
    %v675 = vsel %vm674, %v195, %v263
    %v676 = vsel %vm99, %v675, %v332
    %vm677 = vcmask 1045504
    %v678 = vsel %vm677, %v676, %v401
    %v679 = vsel %vm674, %v467, %v535
    %v680 = vsel %vm99, %v679, %v604
    %v681 = vsel %vm677, %v680, %v673
    %v682 = vld [vmem:[%s6] sm:$0xff]
    %v683 = vld [vmem:[%s6 + $0x8] sm:$0xff]
    %v684 = vld [vmem:[%s6 + $0x10] sm:$0xff]
    %v685 = vld [vmem:[%s6 + $0x18] sm:$0xff]
    %v686 = vld [vmem:[#allocation5] sm:$0xff]
    %v687 = vld [vmem:[#allocation5 + $0x8] sm:$0xff]
    %v688 = vld [vmem:[#allocation5 + $0x10] sm:$0xff]
    %v689 = vld [vmem:[#allocation5 + $0x18] sm:$0xff]
    %v690 = vld [vmem:[%s8] sm:$0x1]
    %v691 = vld [vmem:[%s9] sm:$0x1]
    %v693 = vperm.slane %v690, 0
    %697 = vrot.lane.b32.xlu0 %v678, 96
    %v698 = vpop.permute.xlu0 %697
    %699 = vrot.lane.b32.xlu0 %v681, 96
    %v700 = vpop.permute.xlu0 %699
    %v701 = vsel %vm130, %v698, 0
    %v703 = vsel %vm130, %v700, 0
    %705 = vmatpush.msra.mxu0 0.0
    %706 = vmatpush.msra.mxu0 0.0
    %707 = vmatpush.msra.mxu0 0.0
    %708 = vmatpush.msra.mxu0 0.0
    %709 = vmatpush.msra.mxu0 0.0
    %710 = vmatpush.msra.mxu0 0.0
    %711 = vmatpush.msra.mxu0 0.0
    %712 = vmatpush.msra.mxu0 0.0
    %713 = vmatpush.msra.mxu0 0.0
    %714 = vmatpush.msra.mxu0 0.0
    %715 = vmatpush.msra.mxu0 0.0
    %716 = vmatpush.msra.mxu0 0.0
    %717 = vmatpush.msra.mxu0 %v685
    %718 = vmatpush.msra.mxu0 %v684
    %719 = vmatpush.msra.mxu0 %v683
    %720 = vmatpush.msra.mxu0 %v682
    %721 = vmatmul.f32.gmra.mxu0 %v701
    %v722 = vpop.f32.mrf.mxu0
    %v723 = vadd.f32 %v693, %v722
    %724 = vmatmul.f32.gmra.mxu0 %v703
    %v725 = vpop.f32.mrf.mxu0
    %v726 = vadd.f32 %v693, %v725
    %727 = vdwg.mxu0
    %v729 = vperm.slane %v691, 0
    %s731 = scalar_lea.vmem %s1, 2
    %v732 = vld [vmem:[%s731] sm:$0x3]
    %v734 = vsel %vm130, %v732, 0
    %736 = vmatpush.msra.mxu0 0.0
    %737 = vmatpush.msra.mxu0 0.0
    %738 = vmatpush.msra.mxu0 0.0
    %739 = vmatpush.msra.mxu0 0.0
    %740 = vmatpush.msra.mxu0 0.0
    %741 = vmatpush.msra.mxu0 0.0
    %742 = vmatpush.msra.mxu0 0.0
    %743 = vmatpush.msra.mxu0 0.0
    %744 = vmatpush.msra.mxu0 0.0
    %745 = vmatpush.msra.mxu0 0.0
    %746 = vmatpush.msra.mxu0 0.0
    %747 = vmatpush.msra.mxu0 0.0
    %748 = vmatpush.msra.mxu0 %v689
    %749 = vmatpush.msra.mxu0 %v688
    %750 = vmatpush.msra.mxu0 %v687
    %751 = vmatpush.msra.mxu0 %v686
    %752 = vmatmul.f32.gmra.mxu0 %v734
    %v753 = vpop.f32.mrf.mxu0
    %v754 = vadd.f32 %v729, %v753
    %755 = vdwg.mxu0
    %v756 = vadd.f32 %v723, %v754
    %v757 = vxor.u32 %v756, 2147483648
    %v758 = vmul.f32 %v757, 1.442695
    %v759 = vpow.pop %v758
    %v760 = vadd.f32 %v759, 1.0
    %v761 = vrcp.pop %v760
    %v762 = vmul.f32 %v760, %v761
    %v763 = vsub.f32 1.0, %v762
    %v764 = vmul.f32 %v761, %v763
    %v765 = vadd.f32 %v761, %v764
    %vm766 = vweird.f32 %v760
    %vm767 = vweird.f32 %v761
    %vm768 = vmor %vm766, %vm767
    %v769 = vsel %vm768, %v761, %v765
    %v770 = vand.u32 2147483647, %v760
    %vm771 = vcmp.eq.f32.partialorder %v770, 8.507059e+37
    %v772 = vand.u32 %v760, 2147483648
    %v773 = vor.u32 1.1754944e-38, %v772
    %v774 = vsel %vm771, %v773, %v769
    %v775 = vmul.f32 1.0, %v774
    %777 = vrot.lane.b32.xlu0 %v754, 64
    %v778 = vpop.permute.xlu0 %777
    %v780 = vmul.f32 %v775, %v778
    %782 = vrot.lane.b32.xlu0 %v780, 64
    %v783 = vpop.permute.xlu0 %782
    %v785 = vadd.f32 %v723, %v783
    %v786 = vtanh.pop %v785
    %v787 = vsub.f32 1.0, %v775
    %789 = vrot.lane.b32.xlu0 %v786, 96
    %v790 = vpop.permute.xlu0 %789
    %v792 = vmul.f32 %v787, %v790
    %793 = vrot.lane.b32.xlu0 %v732, 32
    %v794 = vpop.permute.xlu0 %793
    %v796 = vmul.f32 %v775, %v794
    %v797 = vadd.f32 %v792, %v796
    %799 = vrot.lane.b32.xlu0 %v797, 96
    %v800 = vpop.permute.xlu0 %799
    %v801 = vsel %vm130, %v800, 0
    %803 = vmatpush.msra.mxu0 0.0
    %804 = vmatpush.msra.mxu0 0.0
    %805 = vmatpush.msra.mxu0 0.0
    %806 = vmatpush.msra.mxu0 0.0
    %807 = vmatpush.msra.mxu0 0.0
    %808 = vmatpush.msra.mxu0 0.0
    %809 = vmatpush.msra.mxu0 0.0
    %810 = vmatpush.msra.mxu0 0.0
    %811 = vmatpush.msra.mxu0 0.0
    %812 = vmatpush.msra.mxu0 0.0
    %813 = vmatpush.msra.mxu0 0.0
    %814 = vmatpush.msra.mxu0 0.0
    %815 = vmatpush.msra.mxu0 %v689
    %816 = vmatpush.msra.mxu0 %v688
    %817 = vmatpush.msra.mxu0 %v687
    %818 = vmatpush.msra.mxu0 %v686
    %819 = vmatmul.f32.gmra.mxu0 %v801
    %v820 = vpop.f32.mrf.mxu0
    %v821 = vadd.f32 %v729, %v820
    %822 = vdwg.mxu0
    %v824 = vrot.slane %v821, 6
    %v826 = vadd.f32 %v723, %v824
    %v827 = vxor.u32 %v826, 2147483648
    %v828 = vmul.f32 %v827, 1.442695
    %v829 = vpow.pop %v828
    %v830 = vadd.f32 %v829, 1.0
    %v831 = vrcp.pop %v830
    %v832 = vmul.f32 %v830, %v831
    %v833 = vsub.f32 1.0, %v832
    %v834 = vmul.f32 %v831, %v833
    %v835 = vadd.f32 %v831, %v834
    %vm836 = vweird.f32 %v830
    %vm837 = vweird.f32 %v831
    %vm838 = vmor %vm836, %vm837
    %v839 = vsel %vm838, %v831, %v835
    %v840 = vand.u32 2147483647, %v830
    %vm841 = vcmp.eq.f32.partialorder %v840, 8.507059e+37
    %v842 = vand.u32 %v830, 2147483648
    %v843 = vor.u32 1.1754944e-38, %v842
    %v844 = vsel %vm841, %v843, %v839
    %v845 = vmul.f32 1.0, %v844
    %846 = vrot.lane.b32.xlu0 %v824, 64
    %v847 = vpop.permute.xlu0 %846
    %v849 = vmul.f32 %v845, %v847
    %851 = vrot.lane.b32.xlu0 %v849, 64
    %v852 = vpop.permute.xlu0 %851
    %v854 = vadd.f32 %v723, %v852
    %v855 = vtanh.pop %v854
    %v856 = vsub.f32 1.0, %v845
    %858 = vrot.lane.b32.xlu0 %v855, 96
    %v859 = vpop.permute.xlu0 %858
    %v861 = vmul.f32 %v856, %v859
    %v862 = vrot.slane %v797, 6
    %v864 = vmul.f32 %v845, %v862
    %v865 = vadd.f32 %v861, %v864
    %v867 = vrot.slane %v865, 2
    %868 = vrot.lane.b32.xlu0 %v867, 96
    %v869 = vpop.permute.xlu0 %868
    %v870 = vsel %vm130, %v869, 0
    %872 = vmatpush.msra.mxu0 0.0
    %873 = vmatpush.msra.mxu0 0.0
    %874 = vmatpush.msra.mxu0 0.0
    %875 = vmatpush.msra.mxu0 0.0
    %876 = vmatpush.msra.mxu0 0.0
    %877 = vmatpush.msra.mxu0 0.0
    %878 = vmatpush.msra.mxu0 0.0
    %879 = vmatpush.msra.mxu0 0.0
    %880 = vmatpush.msra.mxu0 0.0
    %881 = vmatpush.msra.mxu0 0.0
    %882 = vmatpush.msra.mxu0 0.0
    %883 = vmatpush.msra.mxu0 0.0
    %884 = vmatpush.msra.mxu0 %v689
    %885 = vmatpush.msra.mxu0 %v688
    %886 = vmatpush.msra.mxu0 %v687
    %887 = vmatpush.msra.mxu0 %v686
    %888 = vmatmul.f32.gmra.mxu0 %v870
    %v889 = vpop.f32.mrf.mxu0
    %v890 = vadd.f32 %v729, %v889
    %891 = vdwg.mxu0
    %v893 = vrot.slane %v890, 4
    %v895 = vadd.f32 %v723, %v893
    %v896 = vxor.u32 %v895, 2147483648
    %v897 = vmul.f32 %v896, 1.442695
    %v898 = vpow.pop %v897
    %v899 = vadd.f32 %v898, 1.0
    %v900 = vrcp.pop %v899
    %v901 = vmul.f32 %v899, %v900
    %v902 = vsub.f32 1.0, %v901
    %v903 = vmul.f32 %v900, %v902
    %v904 = vadd.f32 %v900, %v903
    %vm905 = vweird.f32 %v899
    %vm906 = vweird.f32 %v900
    %vm907 = vmor %vm905, %vm906
    %v908 = vsel %vm907, %v900, %v904
    %v909 = vand.u32 2147483647, %v899
    %vm910 = vcmp.eq.f32.partialorder %v909, 8.507059e+37
    %v911 = vand.u32 %v899, 2147483648
    %v912 = vor.u32 1.1754944e-38, %v911
    %v913 = vsel %vm910, %v912, %v908
    %v914 = vmul.f32 1.0, %v913
    %915 = vrot.lane.b32.xlu0 %v893, 64
    %v916 = vpop.permute.xlu0 %915
    %v918 = vmul.f32 %v914, %v916
    %920 = vrot.lane.b32.xlu0 %v918, 64
    %v921 = vpop.permute.xlu0 %920
    %v923 = vadd.f32 %v723, %v921
    %v924 = vtanh.pop %v923
    %v925 = vsub.f32 1.0, %v914
    %927 = vrot.lane.b32.xlu0 %v924, 96
    %v928 = vpop.permute.xlu0 %927
    %v930 = vmul.f32 %v925, %v928
    %v931 = vrot.slane %v865, 6
    %v933 = vmul.f32 %v914, %v931
    %v934 = vadd.f32 %v930, %v933
    %v936 = vrot.slane %v934, 4
    %937 = vrot.lane.b32.xlu0 %v936, 96
    %v938 = vpop.permute.xlu0 %937
    %v939 = vsel %vm130, %v938, 0
    %941 = vmatpush.msra.mxu0 0.0
    %942 = vmatpush.msra.mxu0 0.0
    %943 = vmatpush.msra.mxu0 0.0
    %944 = vmatpush.msra.mxu0 0.0
    %945 = vmatpush.msra.mxu0 0.0
    %946 = vmatpush.msra.mxu0 0.0
    %947 = vmatpush.msra.mxu0 0.0
    %948 = vmatpush.msra.mxu0 0.0
    %949 = vmatpush.msra.mxu0 0.0
    %950 = vmatpush.msra.mxu0 0.0
    %951 = vmatpush.msra.mxu0 0.0
    %952 = vmatpush.msra.mxu0 0.0
    %953 = vmatpush.msra.mxu0 %v689
    %954 = vmatpush.msra.mxu0 %v688
    %955 = vmatpush.msra.mxu0 %v687
    %956 = vmatpush.msra.mxu0 %v686
    %957 = vmatmul.f32.gmra.mxu0 %v939
    %v958 = vpop.f32.mrf.mxu0
    %v959 = vadd.f32 %v729, %v958
    %960 = vdwg.mxu0
    %v962 = vrot.slane %v959, 2
    %v964 = vadd.f32 %v723, %v962
    %v965 = vxor.u32 %v964, 2147483648
    %v966 = vmul.f32 %v965, 1.442695
    %v967 = vpow.pop %v966
    %v968 = vadd.f32 %v967, 1.0
    %v969 = vrcp.pop %v968
    %v970 = vmul.f32 %v968, %v969
    %v971 = vsub.f32 1.0, %v970
    %v972 = vmul.f32 %v969, %v971
    %v973 = vadd.f32 %v969, %v972
    %vm974 = vweird.f32 %v968
    %vm975 = vweird.f32 %v969
    %vm976 = vmor %vm974, %vm975
    %v977 = vsel %vm976, %v969, %v973
    %v978 = vand.u32 2147483647, %v968
    %vm979 = vcmp.eq.f32.partialorder %v978, 8.507059e+37
    %v980 = vand.u32 %v968, 2147483648
    %v981 = vor.u32 1.1754944e-38, %v980
    %v982 = vsel %vm979, %v981, %v977
    %v983 = vmul.f32 1.0, %v982
    %984 = vrot.lane.b32.xlu0 %v962, 64
    %v985 = vpop.permute.xlu0 %984
    %v987 = vmul.f32 %v983, %v985
    %989 = vrot.lane.b32.xlu0 %v987, 64
    %v990 = vpop.permute.xlu0 %989
    %v992 = vadd.f32 %v723, %v990
    %v993 = vtanh.pop %v992
    %v994 = vsub.f32 1.0, %v983
    %996 = vrot.lane.b32.xlu0 %v993, 96
    %v997 = vpop.permute.xlu0 %996
    %v999 = vmul.f32 %v994, %v997
    %v1000 = vrot.slane %v934, 6
    %v1002 = vmul.f32 %v983, %v1000
    %v1003 = vadd.f32 %v999, %v1002
    %v1005 = vrot.slane %v1003, 6
    %1006 = vrot.lane.b32.xlu0 %v1005, 96
    %v1007 = vpop.permute.xlu0 %1006
    %v1008 = vsel %vm130, %v1007, 0
    %1010 = vmatpush.msra.mxu0 0.0
    %1011 = vmatpush.msra.mxu0 0.0
    %1012 = vmatpush.msra.mxu0 0.0
    %1013 = vmatpush.msra.mxu0 0.0
    %1014 = vmatpush.msra.mxu0 0.0
    %1015 = vmatpush.msra.mxu0 0.0
    %1016 = vmatpush.msra.mxu0 0.0
    %1017 = vmatpush.msra.mxu0 0.0
    %1018 = vmatpush.msra.mxu0 0.0
    %1019 = vmatpush.msra.mxu0 0.0
    %1020 = vmatpush.msra.mxu0 0.0
    %1021 = vmatpush.msra.mxu0 0.0
    %1022 = vmatpush.msra.mxu0 %v689
    %1023 = vmatpush.msra.mxu0 %v688
    %1024 = vmatpush.msra.mxu0 %v687
    %1025 = vmatpush.msra.mxu0 %v686
    %1026 = vmatmul.f32.gmra.mxu0 %v1008
    %v1027 = vpop.f32.mrf.mxu0
    %v1028 = vadd.f32 %v729, %v1027
    %1029 = vdwg.mxu0
    %v1030 = vadd.f32 %v726, %v1028
    %v1031 = vxor.u32 %v1030, 2147483648
    %v1032 = vmul.f32 %v1031, 1.442695
    %v1033 = vpow.pop %v1032
    %v1034 = vadd.f32 %v1033, 1.0
    %v1035 = vrcp.pop %v1034
    %v1036 = vmul.f32 %v1034, %v1035
    %v1037 = vsub.f32 1.0, %v1036
    %v1038 = vmul.f32 %v1035, %v1037
    %v1039 = vadd.f32 %v1035, %v1038
    %vm1040 = vweird.f32 %v1034
    %vm1041 = vweird.f32 %v1035
    %vm1042 = vmor %vm1040, %vm1041
    %v1043 = vsel %vm1042, %v1035, %v1039
    %v1044 = vand.u32 2147483647, %v1034
    %vm1045 = vcmp.eq.f32.partialorder %v1044, 8.507059e+37
    %v1046 = vand.u32 %v1034, 2147483648
    %v1047 = vor.u32 1.1754944e-38, %v1046
    %v1048 = vsel %vm1045, %v1047, %v1043
    %v1049 = vmul.f32 1.0, %v1048
    %1051 = vrot.lane.b32.xlu0 %v1028, 64
    %v1052 = vpop.permute.xlu0 %1051
    %v1054 = vmul.f32 %v1049, %v1052
    %1056 = vrot.lane.b32.xlu0 %v1054, 64
    %v1057 = vpop.permute.xlu0 %1056
    %v1059 = vadd.f32 %v726, %v1057
    %v1060 = vtanh.pop %v1059
    %v1061 = vsub.f32 1.0, %v1049
    %1063 = vrot.lane.b32.xlu0 %v1060, 96
    %v1064 = vpop.permute.xlu0 %1063
    %v1066 = vmul.f32 %v1061, %v1064
    %v1068 = vmul.f32 %v1049, %v1005
    %v1069 = vadd.f32 %v1066, %v1068
    %1071 = vrot.lane.b32.xlu0 %v1069, 96
    %v1072 = vpop.permute.xlu0 %1071
    %v1073 = vsel %vm130, %v1072, 0
    %1075 = vmatpush.msra.mxu0 0.0
    %1076 = vmatpush.msra.mxu0 0.0
    %1077 = vmatpush.msra.mxu0 0.0
    %1078 = vmatpush.msra.mxu0 0.0
    %1079 = vmatpush.msra.mxu0 0.0
    %1080 = vmatpush.msra.mxu0 0.0
    %1081 = vmatpush.msra.mxu0 0.0
    %1082 = vmatpush.msra.mxu0 0.0
    %1083 = vmatpush.msra.mxu0 0.0
    %1084 = vmatpush.msra.mxu0 0.0
    %1085 = vmatpush.msra.mxu0 0.0
    %1086 = vmatpush.msra.mxu0 0.0
    %1087 = vmatpush.msra.mxu0 %v689
    %1088 = vmatpush.msra.mxu0 %v688
    %1089 = vmatpush.msra.mxu0 %v687
    %1090 = vmatpush.msra.mxu0 %v686
    %1091 = vmatmul.f32.gmra.mxu0 %v1073
    %v1092 = vpop.f32.mrf.mxu0
    %v1093 = vadd.f32 %v729, %v1092
    %1094 = vdwg.mxu0
    %v1096 = vrot.slane %v1093, 6
    %v1098 = vadd.f32 %v726, %v1096
    %v1099 = vxor.u32 %v1098, 2147483648
    %v1100 = vmul.f32 %v1099, 1.442695
    %v1101 = vpow.pop %v1100
    %v1102 = vadd.f32 %v1101, 1.0
    %v1103 = vrcp.pop %v1102
    %v1104 = vmul.f32 %v1102, %v1103
    %v1105 = vsub.f32 1.0, %v1104
    %v1106 = vmul.f32 %v1103, %v1105
    %v1107 = vadd.f32 %v1103, %v1106
    %vm1108 = vweird.f32 %v1102
    %vm1109 = vweird.f32 %v1103
    %vm1110 = vmor %vm1108, %vm1109
    %v1111 = vsel %vm1110, %v1103, %v1107
    %v1112 = vand.u32 2147483647, %v1102
    %vm1113 = vcmp.eq.f32.partialorder %v1112, 8.507059e+37
    %v1114 = vand.u32 %v1102, 2147483648
    %v1115 = vor.u32 1.1754944e-38, %v1114
    %v1116 = vsel %vm1113, %v1115, %v1111
    %v1117 = vmul.f32 1.0, %v1116
    %1118 = vrot.lane.b32.xlu0 %v1096, 64
    %v1119 = vpop.permute.xlu0 %1118
    %v1121 = vmul.f32 %v1117, %v1119
    %1123 = vrot.lane.b32.xlu0 %v1121, 64
    %v1124 = vpop.permute.xlu0 %1123
    %v1126 = vadd.f32 %v726, %v1124
    %v1127 = vtanh.pop %v1126
    %v1128 = vsub.f32 1.0, %v1117
    %1130 = vrot.lane.b32.xlu0 %v1127, 96
    %v1131 = vpop.permute.xlu0 %1130
    %v1133 = vmul.f32 %v1128, %v1131
    %v1134 = vrot.slane %v1069, 6
    %v1136 = vmul.f32 %v1117, %v1134
    %v1137 = vadd.f32 %v1133, %v1136
    %v1139 = vrot.slane %v1137, 2
    %1140 = vrot.lane.b32.xlu0 %v1139, 96
    %v1141 = vpop.permute.xlu0 %1140
    %v1142 = vsel %vm130, %v1141, 0
    %1144 = vmatpush.msra.mxu0 0.0
    %1145 = vmatpush.msra.mxu0 0.0
    %1146 = vmatpush.msra.mxu0 0.0
    %1147 = vmatpush.msra.mxu0 0.0
    %1148 = vmatpush.msra.mxu0 0.0
    %1149 = vmatpush.msra.mxu0 0.0
    %1150 = vmatpush.msra.mxu0 0.0
    %1151 = vmatpush.msra.mxu0 0.0
    %1152 = vmatpush.msra.mxu0 0.0
    %1153 = vmatpush.msra.mxu0 0.0
    %1154 = vmatpush.msra.mxu0 0.0
    %1155 = vmatpush.msra.mxu0 0.0
    %1156 = vmatpush.msra.mxu0 %v689
    %1157 = vmatpush.msra.mxu0 %v688
    %1158 = vmatpush.msra.mxu0 %v687
    %1159 = vmatpush.msra.mxu0 %v686
    %1160 = vmatmul.f32.gmra.mxu0 %v1142
    %v1161 = vpop.f32.mrf.mxu0
    %v1162 = vadd.f32 %v729, %v1161
    %1163 = vdwg.mxu0
    %v1165 = vrot.slane %v1162, 4
    %v1167 = vadd.f32 %v726, %v1165
    %v1168 = vxor.u32 %v1167, 2147483648
    %v1169 = vmul.f32 %v1168, 1.442695
    %v1170 = vpow.pop %v1169
    %v1171 = vadd.f32 %v1170, 1.0
    %v1172 = vrcp.pop %v1171
    %v1173 = vmul.f32 %v1171, %v1172
    %v1174 = vsub.f32 1.0, %v1173
    %v1175 = vmul.f32 %v1172, %v1174
    %v1176 = vadd.f32 %v1172, %v1175
    %vm1177 = vweird.f32 %v1171
    %vm1178 = vweird.f32 %v1172
    %vm1179 = vmor %vm1177, %vm1178
    %v1180 = vsel %vm1179, %v1172, %v1176
    %v1181 = vand.u32 2147483647, %v1171
    %vm1182 = vcmp.eq.f32.partialorder %v1181, 8.507059e+37
    %v1183 = vand.u32 %v1171, 2147483648
    %v1184 = vor.u32 1.1754944e-38, %v1183
    %v1185 = vsel %vm1182, %v1184, %v1180
    %v1186 = vmul.f32 1.0, %v1185
    %1187 = vrot.lane.b32.xlu0 %v1165, 64
    %v1188 = vpop.permute.xlu0 %1187
    %v1190 = vmul.f32 %v1186, %v1188
    %1192 = vrot.lane.b32.xlu0 %v1190, 64
    %v1193 = vpop.permute.xlu0 %1192
    %v1195 = vadd.f32 %v726, %v1193
    %v1196 = vtanh.pop %v1195
    %v1197 = vsub.f32 1.0, %v1186
    %1199 = vrot.lane.b32.xlu0 %v1196, 96
    %v1200 = vpop.permute.xlu0 %1199
    %v1202 = vmul.f32 %v1197, %v1200
    %v1203 = vrot.slane %v1137, 6
    %v1205 = vmul.f32 %v1186, %v1203
    %v1206 = vadd.f32 %v1202, %v1205
    %v1208 = vrot.slane %v1206, 4
    %1209 = vrot.lane.b32.xlu0 %v1208, 96
    %v1210 = vpop.permute.xlu0 %1209
    %v1211 = vsel %vm130, %v1210, 0
    %1213 = vmatpush.msra.mxu0 0.0
    %1214 = vmatpush.msra.mxu0 0.0
    %1215 = vmatpush.msra.mxu0 0.0
    %1216 = vmatpush.msra.mxu0 0.0
    %1217 = vmatpush.msra.mxu0 0.0
    %1218 = vmatpush.msra.mxu0 0.0
    %1219 = vmatpush.msra.mxu0 0.0
    %1220 = vmatpush.msra.mxu0 0.0
    %1221 = vmatpush.msra.mxu0 0.0
    %1222 = vmatpush.msra.mxu0 0.0
    %1223 = vmatpush.msra.mxu0 0.0
    %1224 = vmatpush.msra.mxu0 0.0
    %1225 = vmatpush.msra.mxu0 %v689
    %1226 = vmatpush.msra.mxu0 %v688
    %1227 = vmatpush.msra.mxu0 %v687
    %1228 = vmatpush.msra.mxu0 %v686
    %1229 = vmatmul.f32.gmra.mxu0 %v1211
    %v1230 = vpop.f32.mrf.mxu0
    %v1231 = vadd.f32 %v729, %v1230
    %1232 = vdwg.mxu0
    %v1234 = vrot.slane %v1231, 2
    %v1236 = vadd.f32 %v726, %v1234
    %v1237 = vxor.u32 %v1236, 2147483648
    %v1238 = vmul.f32 %v1237, 1.442695
    %v1239 = vpow.pop %v1238
    %v1240 = vadd.f32 %v1239, 1.0
    %v1241 = vrcp.pop %v1240
    %v1242 = vmul.f32 %v1240, %v1241
    %v1243 = vsub.f32 1.0, %v1242
    %v1244 = vmul.f32 %v1241, %v1243
    %v1245 = vadd.f32 %v1241, %v1244
    %vm1246 = vweird.f32 %v1240
    %vm1247 = vweird.f32 %v1241
    %vm1248 = vmor %vm1246, %vm1247
    %v1249 = vsel %vm1248, %v1241, %v1245
    %v1250 = vand.u32 2147483647, %v1240
    %vm1251 = vcmp.eq.f32.partialorder %v1250, 8.507059e+37
    %v1252 = vand.u32 %v1240, 2147483648
    %v1253 = vor.u32 1.1754944e-38, %v1252
    %v1254 = vsel %vm1251, %v1253, %v1249
    %v1255 = vmul.f32 1.0, %v1254
    %1256 = vrot.lane.b32.xlu0 %v1234, 64
    %v1257 = vpop.permute.xlu0 %1256
    %v1259 = vmul.f32 %v1255, %v1257
    %1261 = vrot.lane.b32.xlu0 %v1259, 64
    %v1262 = vpop.permute.xlu0 %1261
    %v1264 = vadd.f32 %v726, %v1262
    %v1265 = vtanh.pop %v1264
    %v1266 = vsub.f32 1.0, %v1255
    %1268 = vrot.lane.b32.xlu0 %v1265, 96
    %v1269 = vpop.permute.xlu0 %1268
    %v1271 = vmul.f32 %v1266, %v1269
    %v1272 = vrot.slane %v1206, 6
    %v1274 = vmul.f32 %v1255, %v1272
    %v1275 = vadd.f32 %v1271, %v1274
    %v1276 = vsel %vm674, %v797, %v865
    %v1277 = vsel %vm99, %v1276, %v934
    %v1278 = vsel %vm677, %v1277, %v1003
    %v1279 = vsel %vm674, %v1069, %v1137
    %v1280 = vsel %vm99, %v1279, %v1206
    %v1281 = vsel %vm677, %v1280, %v1275
    %1284 = vrot.lane.b32.xlu0 %v673, 96
    %v1285 = vpop.permute.xlu0 %1284
    %1286 = vrot.lane.b32.xlu0 %v1275, 96
    %v1287 = vpop.permute.xlu0 %1286
    %vm1290 = vcmask 261126
    %1291 = vst.msk [vmem:[#allocation7 - $0x6] sm:$0xc0] %vm1290, %v1285
    %1292 = vst.msk [vmem:[#allocation7 - $0x4] sm:$0xc0] %vm1290, %v1287
    %v1293 = vld [vmem:[%s10] sm:$0xff]
    %v1294 = vld [vmem:[%s10 + $0x8] sm:$0xff]
    %v1295 = vld [vmem:[%s10 + $0x10] sm:$0xff]
    %v1296 = vld [vmem:[%s10 + $0x18] sm:$0xff]
    %v1297 = vld [vmem:[%s11] sm:$0x1]
    %v1299 = vperm.slane %v1297, 0
    %1303 = vrot.lane.b32.xlu0 %v1278, 96
    %v1304 = vpop.permute.xlu0 %1303
    %1305 = vrot.lane.b32.xlu0 %v1281, 96
    %v1306 = vpop.permute.xlu0 %1305
    %v1307 = vsel %vm130, %v1304, 0
    %v1309 = vsel %vm130, %v1306, 0
    %1311 = vmatpush.msra.mxu0 0.0
    %1312 = vmatpush.msra.mxu0 0.0
    %1313 = vmatpush.msra.mxu0 0.0
    %1314 = vmatpush.msra.mxu0 0.0
    %1315 = vmatpush.msra.mxu0 0.0
    %1316 = vmatpush.msra.mxu0 0.0
    %1317 = vmatpush.msra.mxu0 0.0
    %1318 = vmatpush.msra.mxu0 0.0
    %1319 = vmatpush.msra.mxu0 0.0
    %1320 = vmatpush.msra.mxu0 0.0
    %1321 = vmatpush.msra.mxu0 0.0
    %1322 = vmatpush.msra.mxu0 0.0
    %1323 = vmatpush.msra.mxu0 %v1296
    %1324 = vmatpush.msra.mxu0 %v1295
    %1325 = vmatpush.msra.mxu0 %v1294
    %1326 = vmatpush.msra.mxu0 %v1293
    %1327 = vmatmul.f32.gmra.mxu0 %v1307
    %v1328 = vpop.f32.mrf.mxu0
    %v1329 = vadd.f32 %v1299, %v1328
    %1330 = vmatmul.f32.gmra.mxu0 %v1309
    %v1331 = vpop.f32.mrf.mxu0
    %v1332 = vadd.f32 %v1299, %v1331
    %1333 = vdwg.mxu0
    %v1334 = vmax.f32 %v1329, 0.0
    %v1335 = vmax.f32 %v1332, 0.0
    %v1336 = vld [vmem:[%s12] sm:$0xff]
    %v1337 = vld [vmem:[%s12 + $0x8] sm:$0xff]
    %v1338 = vld [vmem:[%s13] sm:$0x1]
    %v1340 = vperm.slane %v1338, 0
    %vm1342 = vcmask 130048
    %v1344 = vsel %vm1342, %v1334, 0
    %v1347 = vsel %vm1342, %v1335, 0
    %1349 = vmatpush.msra.mxu0 0.0
    %1350 = vmatpush.msra.mxu0 0.0
    %1351 = vmatpush.msra.mxu0 0.0
    %1352 = vmatpush.msra.mxu0 0.0
    %1353 = vmatpush.msra.mxu0 0.0
    %1354 = vmatpush.msra.mxu0 0.0
    %1355 = vmatpush.msra.mxu0 0.0
    %1356 = vmatpush.msra.mxu0 0.0
    %1357 = vmatpush.msra.mxu0 0.0
    %1358 = vmatpush.msra.mxu0 0.0
    %1359 = vmatpush.msra.mxu0 0.0
    %1360 = vmatpush.msra.mxu0 0.0
    %1361 = vmatpush.msra.mxu0 0.0
    %1362 = vmatpush.msra.mxu0 0.0
    %1363 = vmatpush.msra.mxu0 %v1337
    %1364 = vmatpush.msra.mxu0 %v1336
    %1365 = vmatmul.f32.gmra.mxu0 %v1344
    %v1366 = vpop.f32.mrf.mxu0
    %v1367 = vadd.f32 %v1340, %v1366
    %1368 = vmatmul.f32.gmra.mxu0 %v1347
    %v1369 = vpop.f32.mrf.mxu0
    %v1370 = vadd.f32 %v1340, %v1369
    %1371 = vdwg.mxu0
    %1372 = vst.msk [vmem:[%s14] sm:$0xff] %vm92, %v1367
    %1373 = vst.msk [vmem:[%s14 + $0x8] sm:$0xff] %vm92, %v1370
    // Predicated region
    $region66: #{tpu_custom_call.1} parent=1 // pred_check
      _
    $region67: #{tpu_custom_call.1} parent=1 // pred_check_branch
      %1375 = sbr.rel (0) target = $region69
    $region68: #{tpu_custom_call.1} parent=1 // pred_region
      _
    $region69: #{tpu_custom_call.1} parent=1 // pred_fallthru
      _
    // Predicated region
    $region70: #{tpu_custom_call.1} parent=1 // pred_check
      _
    $region71: #{tpu_custom_call.1} parent=1 // pred_check_branch
      %1377 = sbr.rel (0) target = $region73
    $region72: #{tpu_custom_call.1} parent=1 // pred_region
      %1379 = vsyncadd [#allocation4], 0
      %s1380 = sshll.u32 [#allocation7], 4
      %s1381 = int_to_ptr.vmem [resolvable:$true] %s1380
      %s1382 = sshll.u32 %s15, 4
      %s1383 = int_to_ptr.hbm [resolvable:$true] %s1382
      %1388 = dma.vmem_to_hbm [thread:$0]  %s1381, 64, %s1383, [#allocation4], 32, 32, 2
    $region73: #{tpu_custom_call.1} parent=1 // pred_fallthru
      _
    // Predicated region
    $region74: #{tpu_custom_call.1} parent=1 // pred_check
      _
    $region75: #{tpu_custom_call.1} parent=1 // pred_check_branch
      %1390 = sbr.rel (0) target = $region77
    $region76: #{tpu_custom_call.1} parent=1 // pred_region
      _
    $region77: #{tpu_custom_call.1} parent=1 // pred_fallthru
      _
    // Predicated region
    $region78: #{tpu_custom_call.1} parent=1 // pred_check
      _
    $region79: #{tpu_custom_call.1} parent=1 // pred_check_branch
      %1392 = sbr.rel (0) target = $region81
    $region80: #{tpu_custom_call.1} parent=1 // pred_region
      %1394 = dma.done [#allocation4], 64
    $region81: #{tpu_custom_call.1} parent=1 // pred_fallthru
      _
    %1395 = vsyncpa [#allocation3], 1
    %1396 = vsyncpa [#allocation6], 1
    %1397 = vsyncpa [#allocation4], 1

</llo_original>
